<compile_context>
chip_gen: v7x
topology: tpu7x:2x2x1
jax: 0.10.0
libtpu: 0.0.40
codegen_flags: <defaults>
</compile_context>

<pallas_src>
from dataclasses import dataclass
from typing import Optional

import jax
import jax.numpy as jnp
from jax.experimental import pallas as pl
from jax.experimental.pallas import tpu as pltpu


@dataclass
class Tracks:
    xy: Optional[jnp.ndarray] = None          # [batch, frame, point, 2]
    visibility: Optional[jnp.ndarray] = None  # [batch, frame, point] bool
    start_frame: int = 0


# ----------------------------------------------------------------------------
# generation-aware defaults & block-size selection
# ----------------------------------------------------------------------------
def _round_up(x, m):
    return ((x + m - 1) // m) * m


def _tpu_defaults():
    """(hw-chunk cap, vmem budget, exp dtype) per TPU generation."""
    try:
        kind = jax.devices()[0].device_kind.lower()
    except Exception:
        kind = ""
    if "v7" in kind or "tpu7" in kind:            # v7x: 64 MiB VMEM -> stay lean
        return 4096, 32 << 20, jnp.bfloat16
    if "v6" in kind:                              # v6e: 128 MiB VMEM, bf16 EUP
        return 8192, 64 << 20, jnp.bfloat16
    if "v5" in kind or "v4" in kind or "v3" in kind:   # no bf16 EUP/VALU
        return 8192, 64 << 20, jnp.float32
    return 4096, 32 << 20, jnp.float32            # unknown: conservative


def _pick_hw_block(HW, cap):
    """Return (hw_blk, padded_HW): hw_blk is a multiple of 128 and divides the
    padded pixel count.  Prefers an exact divisor of HW (no padding / no HBM
    copy); otherwise pads to a multiple of the cap and masks in-kernel."""
    cap = max(128, (cap // 128) * 128)
    if HW <= cap:
        hw_p = _round_up(HW, 128)
        return hw_p, hw_p
    best = 0
    if HW % 128 == 0:
        c = 128
        while c <= cap:
            if HW % c == 0:
                best = c
            c += 128
    if best >= 1024:
        return best, HW
    return cap, _round_up(HW, cap)


def _vmem_estimate(P, hw_blk, itemsize):
    Pp = _round_up(P, 8)
    sub = 16 if itemsize < 4 else 8               # (3, blk) sublane padding
    fpix = 2 * sub * hw_blk * itemsize            # double-buffered frame chunk
    interm = 10 * Pp * hw_blk * 4                 # (P, blk) f32 temporaries
    small = 16 * Pp * 128 * 4                     # A / cbias / out / scratch
    return fpix + interm + small


# ----------------------------------------------------------------------------
# Pallas kernel (built per shape): one (batch, frame, hw-chunk) grid step.
#   a_ref  (P, 3)       f32   folded & scaled query features  (scale * qf @ Wp^T)
#   c_ref  (P, 1)       f32   folded & scaled query bias      (scale * qf @ bp)
#   f_ref  (3, hw_blk)  any   frame-pixel chunk, lane-dense channel rows
#   o_ref  (P, 4)       f32   columns = [x, y, max-logit, 0], written on last chunk
#   scratch: m / l / sum(p*lin) / sum(p*y), each (P, 1) f32 (online softmax)
# ----------------------------------------------------------------------------
def _make_track_kernel(P, hw_blk, HW, W, masked, exp_dtype):
    w_f = float(W)
    inv_w = 1.0 / float(W)
    bf16_exp = jnp.dtype(exp_dtype) == jnp.dtype(jnp.bfloat16)

    def kernel(a_ref, c_ref, f_ref, o_ref, m_sc, l_sc, sl_sc, sy_sc):
        j = pl.program_id(2)

        @pl.when(j == 0)
        def _():
            m_sc[...] = jnp.full_like(m_sc, -1e30)
            l_sc[...] = jnp.zeros_like(l_sc)
            sl_sc[...] = jnp.zeros_like(sl_sc)
            sy_sc[...] = jnp.zeros_like(sy_sc)

        # folded query factors (tiny, f32)
        a = a_ref[...]                                   # (P, 3)
        a0 = a[:, 0:1]
        a1 = a[:, 1:2]
        a2 = a[:, 2:3]                                   # (P, 1)

        # frame-pixel channels for this chunk, lane-dense rows
        fp0 = f_ref[0:1, :].astype(jnp.float32)          # (1, blk)
        fp1 = f_ref[1:2, :].astype(jnp.float32)
        fp2 = f_ref[2:3, :].astype(jnp.float32)

        # correlation: K=3 -> broadcast FMAs on the VPU (no MXU, no extended-slot
        # contention with the XLU reductions below)
        s = a0 * fp0 + a1 * fp1 + a2 * fp2               # (P, blk) f32

        # global linear pixel index of this chunk (lane iota; exact: HW < 2**22)
        lin_i = jax.lax.broadcasted_iota(jnp.int32, (1, hw_blk), 1) + j * hw_blk
        lin = lin_i.astype(jnp.float32)                  # (1, blk)
        yc = jnp.floor((lin + 0.5) * inv_w)              # == lin // W

        if masked:                                       # padded-pixel tail
            s = jnp.where(lin_i < HW, s, jnp.float32(-1e30))

        # online softmax update (state in VMEM scratch, carried across chunks)
        m_prev = m_sc[...]
        s_max = jnp.max(s, axis=-1, keepdims=True)       # (P, 1)
        m_new = jnp.maximum(m_prev, s_max)
        alpha = jnp.exp(m_prev - m_new)                  # (P, 1) f32
        z = s - m_new
        if bf16_exp:                                     # bf16 EUP path (v6e/v7x)
            p = jnp.exp(z.astype(jnp.bfloat16)).astype(jnp.float32)
        else:
            p = jnp.exp(z)
        l_sc[...] = alpha * l_sc[...] + jnp.sum(p, axis=-1, keepdims=True)
        sl_sc[...] = alpha * sl_sc[...] + jnp.sum(p * lin, axis=-1, keepdims=True)
        sy_sc[...] = alpha * sy_sc[...] + jnp.sum(p * yc, axis=-1, keepdims=True)
        m_sc[...] = m_new

        @pl.when(j == pl.num_programs(2) - 1)
        def _():
            inv_l = pl.reciprocal(l_sc[...], approx=True)     # EUP, (P,1) only
            y = sy_sc[...] * inv_l
            x = sl_sc[...] * inv_l - y * w_f   # sum(p*x) = sum(p*lin) - W*sum(p*y)
            vis = m_sc[...] + c_ref[...]       # max logit of projected scores
            col = jax.lax.broadcasted_iota(jnp.int32, (P, 4), 1)
            out = jnp.where(col == 0, x,
                  jnp.where(col == 1, y,
                  jnp.where(col == 2, vis, jnp.float32(0.0))))
            o_ref[...] = out

    return kernel


# ----------------------------------------------------------------------------
# wrapper
# ----------------------------------------------------------------------------
def track_predictor_forward(videos, query_frame, wp, bp, grid_hw=(8, 8),
                            vis_threshold=0.0, hw_block=None, exp_dtype=None,
                            vmem_limit_bytes=None):
    """videos: [B, F, 3, H, W] (NCHW per frame, as in PyTorch)."""
    B, F, Cin, H, W = videos.shape
    assert Cin == 3
    Gh, Gw = grid_hw
    P = Gh * Gw
    HW = H * W
    assert HW < (1 << 22), "float index trick requires H*W < 2**22 pixels"
    C = wp.shape[1]

    cap, budget, auto_exp = _tpu_defaults()
    if hw_block is None:
        hw_blk, HWp = _pick_hw_block(HW, cap)
    else:
        hw_blk = max(128, _round_up(int(hw_block), 128))
        HWp = _round_up(HW, hw_blk)
    n_chunks = HWp // hw_blk
    masked = HWp != HW
    if exp_dtype is None:
        exp_dtype = auto_exp

    # ---- query-side folded factors (tiny; computed once, f32)
    ys = (jnp.arange(Gh) * H) // Gh + H // (2 * Gh)       # [Gh]
    xs = (jnp.arange(Gw) * W) // Gw + W // (2 * Gw)       # [Gw]
    yy, xx = jnp.meshgrid(ys, xs, indexing="ij")
    yy = yy.reshape(-1)
    xx = xx.reshape(-1)                                   # [P]

    vq = videos[:, query_frame]                           # [B, 3, H, W]
    qpix = vq[:, :, yy, xx].astype(jnp.float32)           # [B, 3, P]
    wp_f = wp.astype(jnp.float32)                         # [3, C]
    bp_f = bp.astype(jnp.float32)                         # [C]

    qf = jnp.einsum("bip,ik->bpk", qpix, wp_f) + bp_f     # [B, P, C]
    scale = 1.0 / jnp.sqrt(jnp.float32(C))
    A = (scale * jnp.einsum("bpk,ik->bpi", qf, wp_f)).astype(jnp.float32)   # [B,P,3]
    cbias = (scale * jnp.einsum("bpk,k->bp", qf, bp_f))[..., None]
    cbias = cbias.astype(jnp.float32)                     # [B, P, 1]

    # ---- frame pixels: native dtype, contiguous reshape only (no HBM relayout)
    fpix = videos.reshape(B, F, Cin, HW)
    if masked:
        fpix = jnp.pad(fpix, ((0, 0), (0, 0), (0, 0), (0, HWp - HW)))

    if vmem_limit_bytes is None:
        est = _vmem_estimate(P, hw_blk, fpix.dtype.itemsize)
        vmem_limit_bytes = int(min(max(est + (16 << 20), 32 << 20), budget))

    kernel = _make_track_kernel(P, hw_blk, HW, W, masked, exp_dtype)

    out = pl.pallas_call(
        kernel,
        out_shape=jax.ShapeDtypeStruct((B, F, P, 4), jnp.float32),
        grid=(B, F, n_chunks),
        in_specs=[
            pl.BlockSpec((None, P, 3), lambda b, f, j: (b, 0, 0)),             # A
            pl.BlockSpec((None, P, 1), lambda b, f, j: (b, 0, 0)),             # cbias
            pl.BlockSpec((None, None, Cin, hw_blk), lambda b, f, j: (b, f, 0, j)),
        ],
        out_specs=pl.BlockSpec((None, None, P, 4), lambda b, f, j: (b, f, 0, 0)),
        scratch_shapes=[pltpu.VMEM((P, 1), jnp.float32)] * 4,
        compiler_params=pltpu.CompilerParams(
            dimension_semantics=("parallel", "parallel", "arbitrary"),
            vmem_limit_bytes=vmem_limit_bytes),
    )(A, cbias, fpix)

    xy = out[..., 0:2]                                    # [B, F, P, 2]
    visibility = out[..., 2] > vis_threshold              # [B, F, P] bool
    return Tracks(xy=xy, visibility=visibility, start_frame=0)


# ----------------------------------------------------------------------------
# pure-JAX reference (unfolded f32 math)
# ----------------------------------------------------------------------------
def _reference_forward(videos, query_frame, wp, bp, grid_hw):
    B, F, Cin, H, W = videos.shape
    Gh, Gw = grid_hw
    HW = H * W
    ys = (jnp.arange(Gh) * H) // Gh + H // (2 * Gh)
    xs = (jnp.arange(Gw) * W) // Gw + W // (2 * Gw)
    yy, xx = jnp.meshgrid(ys, xs, indexing="ij")
    yy = yy.reshape(-1)
    xx = xx.reshape(-1)
    vq = videos[:, query_frame]
    qpix = jnp.transpose(vq[:, :, yy, xx], (0, 2, 1)).astype(jnp.float32)    # [B,P,3]
    fpix = jnp.transpose(videos, (0, 1, 3, 4, 2)).reshape(B, F, HW, 3)
    fpix = fpix.astype(jnp.float32)
    wp_f = wp.astype(jnp.float32)
    bp_f = bp.astype(jnp.float32)
    qf = qpix @ wp_f + bp_f                                                  # [B,P,C]
    ff = fpix @ wp_f + bp_f                                                  # [B,F,HW,C]
    scale = 1.0 / jnp.sqrt(jnp.float32(wp.shape[1]))
    scores = jnp.einsum("bpc,bfhc->bfph", qf, ff) * scale                    # [B,F,P,HW]
    m = jnp.max(scores, axis=-1)
    probs = jax.nn.softmax(scores, axis=-1)
    gy, gx = jnp.meshgrid(jnp.arange(H, dtype=jnp.float32),
                          jnp.arange(W, dtype=jnp.float32), indexing="ij")
    coords = jnp.stack([gx.reshape(-1), gy.reshape(-1)], axis=-1)            # [HW,2]
    xy = jnp.einsum("bfph,hc->bfpc", probs, coords)
    return xy, m


if __name__ == "__main__":
    # small, module-consistent shapes
    B, F, H, W = 2, 4, 16, 16
    C = 32            # feature dim of the 1x1 projection
    GRID = (8, 8)     # 64 query points
    P = GRID[0] * GRID[1]

    key = jax.random.PRNGKey(0)
    k_vid, k_w, k_b = jax.random.split(key, 3)

    videos = jax.random.normal(k_vid, (B, F, 3, H, W), dtype=jnp.float32)
    wp = jax.random.normal(k_w, (3, C), dtype=jnp.float32) * 0.1
    bp = jax.random.normal(k_b, (C,), dtype=jnp.float32) * 0.01

    tracks = track_predictor_forward(videos, query_frame=0, wp=wp, bp=bp,
                                     grid_hw=GRID)
    jax.block_until_ready(tracks.xy)
    jax.block_until_ready(tracks.visibility)

    assert tracks.xy.shape == (B, F, P, 2)
    assert tracks.visibility.shape == (B, F, P)
    assert tracks.xy.dtype == jnp.float32
    assert tracks.visibility.dtype == jnp.bool_
    assert bool(jnp.all(jnp.isfinite(tracks.xy)))
    assert bool(jnp.all(tracks.xy[..., 0] >= -0.1))
    assert bool(jnp.all(tracks.xy[..., 0] <= W - 1 + 0.1))
    assert bool(jnp.all(tracks.xy[..., 1] >= -0.1))
    assert bool(jnp.all(tracks.xy[..., 1] <= H - 1 + 0.1))

    xy_ref, m_ref = _reference_forward(videos, 0, wp, bp, GRID)
    max_err = float(jnp.max(jnp.abs(tracks.xy - xy_ref)))
    assert max_err < 0.5, f"soft-argmax mismatch: {max_err}"
    vis_agree = float(jnp.mean((tracks.visibility == (m_ref > 0.0))
                               .astype(jnp.float32)))
    assert vis_agree > 0.9, f"visibility agreement too low: {vis_agree}"

    # multi-chunk path (online softmax across several grid steps per frame)
    tracks_mc = track_predictor_forward(videos, query_frame=0, wp=wp, bp=bp,
                                        grid_hw=GRID, hw_block=128)
    jax.block_until_ready(tracks_mc.xy)
    err_mc = float(jnp.max(jnp.abs(tracks_mc.xy - xy_ref)))
    assert err_mc < 0.5, f"multi-chunk soft-argmax mismatch: {err_mc}"

    # non-multiple-of-128 resolution (padded + masked tail), non-64 point count
    H2, W2, GRID2 = 12, 20, (4, 4)
    videos2 = jax.random.normal(jax.random.PRNGKey(1), (1, 3, 3, H2, W2),
                                dtype=jnp.float32)
    tracks2 = track_predictor_forward(videos2, query_frame=0, wp=wp, bp=bp,
                                      grid_hw=GRID2)
    jax.block_until_ready(tracks2.xy)
    xy_ref2, _ = _reference_forward(videos2, 0, wp, bp, GRID2)
    err2 = float(jnp.max(jnp.abs(tracks2.xy - xy_ref2)))
    assert tracks2.xy.shape == (1, 3, GRID2[0] * GRID2[1], 2)
    assert bool(jnp.all(jnp.isfinite(tracks2.xy)))
    assert err2 < 0.5, f"padded-path soft-argmax mismatch: {err2}"

    print("KERNEL_OK")
</pallas_src>

<mosaic_0001>
module attributes {stable_mosaic.version = 11 : i64} {
  func.func @kernel(%arg0: i32, %arg1: i32, %arg2: i32, %arg3: memref<1x64x3xf32, #tpu.memory_space<vmem>>, %arg4: memref<1x64x1xf32, #tpu.memory_space<vmem>>, %arg5: memref<1x1x3x256xf32, #tpu.memory_space<vmem>>, %arg6: memref<1x1x64x4xf32, #tpu.memory_space<vmem>>, %arg7: memref<64x1xf32, #tpu.memory_space<vmem>>, %arg8: memref<64x1xf32, #tpu.memory_space<vmem>>, %arg9: memref<64x1xf32, #tpu.memory_space<vmem>>, %arg10: memref<64x1xf32, #tpu.memory_space<vmem>>) attributes {dimension_semantics = [#tpu.dimension_semantics<parallel>, #tpu.dimension_semantics<parallel>, #tpu.dimension_semantics<arbitrary>], iteration_bounds = array<i64: 2, 4, 1>, scalar_prefetch = 0 : i64, scratch_operands = 4 : i64, tpu.core_type = #tpu.core_type<tc>, window_params = [{transform_indices = @transform_0, window_bounds = array<i64: 1, 64, 3>}, {transform_indices = @transform_1, window_bounds = array<i64: 1, 64, 1>}, {transform_indices = @transform_2, window_bounds = array<i64: 1, 1, 3, 256>}, {transform_indices = @transform_3, window_bounds = array<i64: 1, 1, 64, 4>}]} {
    %c0_i32 = arith.constant 0 : i32
    %0 = arith.cmpi eq, %arg2, %c0_i32 : i32
    %1 = arith.extui %0 : i1 to i32
    %c0_i32_0 = arith.constant 0 : i32
    %2 = arith.cmpi ne, %1, %c0_i32_0 : i32
    scf.if %2 {
      %cst_36 = arith.constant -1.000000e+30 : f32
      %70 = vector.broadcast %cst_36 : f32 to vector<64x1xf32>
      %c0_37 = arith.constant 0 : index
      %c0_38 = arith.constant 0 : index
      %71 = vector.load %arg7[%c0_37, %c0_38] : memref<64x1xf32, #tpu.memory_space<vmem>>, vector<64x1xf32>
      tpu.vector_store %arg7[%c0_37, %c0_38], %70 {strides = array<i32>} : memref<64x1xf32, #tpu.memory_space<vmem>>, vector<64x1xf32>,
      %cst_39 = arith.constant 0.000000e+00 : f32
      %72 = vector.broadcast %cst_39 : f32 to vector<64x1xf32>
      %c0_40 = arith.constant 0 : index
      %c0_41 = arith.constant 0 : index
      %73 = vector.load %arg8[%c0_40, %c0_41] : memref<64x1xf32, #tpu.memory_space<vmem>>, vector<64x1xf32>
      tpu.vector_store %arg8[%c0_40, %c0_41], %72 {strides = array<i32>} : memref<64x1xf32, #tpu.memory_space<vmem>>, vector<64x1xf32>,
      %cst_42 = arith.constant 0.000000e+00 : f32
      %74 = vector.broadcast %cst_42 : f32 to vector<64x1xf32>
      %c0_43 = arith.constant 0 : index
      %c0_44 = arith.constant 0 : index
      %75 = vector.load %arg9[%c0_43, %c0_44] : memref<64x1xf32, #tpu.memory_space<vmem>>, vector<64x1xf32>
      tpu.vector_store %arg9[%c0_43, %c0_44], %74 {strides = array<i32>} : memref<64x1xf32, #tpu.memory_space<vmem>>, vector<64x1xf32>,
      %cst_45 = arith.constant 0.000000e+00 : f32
      %76 = vector.broadcast %cst_45 : f32 to vector<64x1xf32>
      %c0_46 = arith.constant 0 : index
      %c0_47 = arith.constant 0 : index
      %77 = vector.load %arg10[%c0_46, %c0_47] : memref<64x1xf32, #tpu.memory_space<vmem>>, vector<64x1xf32>
      tpu.vector_store %arg10[%c0_46, %c0_47], %76 {strides = array<i32>} : memref<64x1xf32, #tpu.memory_space<vmem>>, vector<64x1xf32>,
    } else {
    }
    %c0 = arith.constant 0 : index
    %c0_1 = arith.constant 0 : index
    %c0_2 = arith.constant 0 : index
    %3 = vector.load %arg3[%c0, %c0_1, %c0_2] : memref<1x64x3xf32, #tpu.memory_space<vmem>>, vector<1x64x3xf32>
    %4 = vector.shape_cast %3 : vector<1x64x3xf32> to vector<64x3xf32>
    %5 = vector.extract_strided_slice %4 {offsets = [0, 0], sizes = [64, 1], strides = [1, 1]} : vector<64x3xf32> to vector<64x1xf32>
    %6 = vector.extract_strided_slice %4 {offsets = [0, 1], sizes = [64, 1], strides = [1, 1]} : vector<64x3xf32> to vector<64x1xf32>
    %7 = vector.extract_strided_slice %4 {offsets = [0, 2], sizes = [64, 1], strides = [1, 1]} : vector<64x3xf32> to vector<64x1xf32>
    %c0_3 = arith.constant 0 : index
    %c0_4 = arith.constant 0 : index
    %c0_5 = arith.constant 0 : index
    %c0_6 = arith.constant 0 : index
    %8 = vector.load %arg5[%c0_3, %c0_4, %c0_5, %c0_6] : memref<1x1x3x256xf32, #tpu.memory_space<vmem>>, vector<1x1x1x256xf32>
    %9 = vector.shape_cast %8 : vector<1x1x1x256xf32> to vector<1x256xf32>
    %c0_7 = arith.constant 0 : index
    %c0_8 = arith.constant 0 : index
    %c1 = arith.constant 1 : index
    %c0_9 = arith.constant 0 : index
    %10 = vector.load %arg5[%c0_7, %c0_8, %c1, %c0_9] : memref<1x1x3x256xf32, #tpu.memory_space<vmem>>, vector<1x1x1x256xf32>
    %11 = vector.shape_cast %10 : vector<1x1x1x256xf32> to vector<1x256xf32>
    %c0_10 = arith.constant 0 : index
    %c0_11 = arith.constant 0 : index
    %c2 = arith.constant 2 : index
    %c0_12 = arith.constant 0 : index
    %12 = vector.load %arg5[%c0_10, %c0_11, %c2, %c0_12] : memref<1x1x3x256xf32, #tpu.memory_space<vmem>>, vector<1x1x1x256xf32>
    %13 = vector.shape_cast %12 : vector<1x1x1x256xf32> to vector<1x256xf32>
    %14 = vector.broadcast %5 : vector<64x1xf32> to vector<64x256xf32>
    %15 = vector.broadcast %9 : vector<1x256xf32> to vector<64x256xf32>
    %16 = arith.mulf %14, %15 : vector<64x256xf32>
    %17 = vector.broadcast %6 : vector<64x1xf32> to vector<64x256xf32>
    %18 = vector.broadcast %11 : vector<1x256xf32> to vector<64x256xf32>
    %19 = arith.mulf %17, %18 : vector<64x256xf32>
    %20 = arith.addf %16, %19 : vector<64x256xf32>
    %21 = vector.broadcast %7 : vector<64x1xf32> to vector<64x256xf32>
    %22 = vector.broadcast %13 : vector<1x256xf32> to vector<64x256xf32>
    %23 = arith.mulf %21, %22 : vector<64x256xf32>
    %24 = arith.addf %20, %23 : vector<64x256xf32>
    %25 = tpu.iota {dimensions = array<i32: 1>} : vector<1x256xi32>
    %c256_i32 = arith.constant 256 : i32
    %26 = arith.muli %arg2, %c256_i32 : i32
    %27 = vector.broadcast %26 : i32 to vector<1x256xi32>
    %28 = arith.addi %25, %27 : vector<1x256xi32>
    %29 = arith.sitofp %28 : vector<1x256xi32> to vector<1x256xf32>
    %cst = arith.constant 5.000000e-01 : f32
    %30 = vector.broadcast %cst : f32 to vector<1x256xf32>
    %31 = arith.addf %29, %30 : vector<1x256xf32>
    %cst_13 = arith.constant 6.250000e-02 : f32
    %32 = vector.broadcast %cst_13 : f32 to vector<1x256xf32>
    %33 = arith.mulf %31, %32 : vector<1x256xf32>
    %34 = math.floor %33 : vector<1x256xf32>
    %c0_14 = arith.constant 0 : index
    %c0_15 = arith.constant 0 : index
    %35 = vector.load %arg7[%c0_14, %c0_15] : memref<64x1xf32, #tpu.memory_space<vmem>>, vector<64x1xf32>
    %cst_16 = arith.constant dense<0xFF800000> : vector<64xf32>
    %36 = vector.multi_reduction <maximumf>, %24, %cst_16 [1] : vector<64x256xf32> to vector<64xf32>
    %37 = vector.shape_cast %36 : vector<64xf32> to vector<64x1xf32>
    %38 = arith.maximumf %35, %37 : vector<64x1xf32>
    %39 = arith.subf %35, %38 : vector<64x1xf32>
    %40 = math.exp %39 : vector<64x1xf32>
    %41 = vector.broadcast %38 : vector<64x1xf32> to vector<64x256xf32>
    %42 = arith.subf %24, %41 : vector<64x256xf32>
    %43 = math.exp %42 : vector<64x256xf32>
    %c0_17 = arith.constant 0 : index
    %c0_18 = arith.constant 0 : index
    %44 = vector.load %arg8[%c0_17, %c0_18] : memref<64x1xf32, #tpu.memory_space<vmem>>, vector<64x1xf32>
    %45 = arith.mulf %40, %44 : vector<64x1xf32>
    %cst_19 = arith.constant dense<0.000000e+00> : vector<64xf32>
    %46 = vector.multi_reduction <add>, %43, %cst_19 [1] : vector<64x256xf32> to vector<64xf32>
    %47 = vector.shape_cast %46 : vector<64xf32> to vector<64x1xf32>
    %48 = arith.addf %45, %47 : vector<64x1xf32>
    %c0_20 = arith.constant 0 : index
    %c0_21 = arith.constant 0 : index
    %49 = vector.load %arg8[%c0_20, %c0_21] : memref<64x1xf32, #tpu.memory_space<vmem>>, vector<64x1xf32>
    tpu.vector_store %arg8[%c0_20, %c0_21], %48 {strides = array<i32>} : memref<64x1xf32, #tpu.memory_space<vmem>>, vector<64x1xf32>,
    %c0_22 = arith.constant 0 : index
    %c0_23 = arith.constant 0 : index
    %50 = vector.load %arg9[%c0_22, %c0_23] : memref<64x1xf32, #tpu.memory_space<vmem>>, vector<64x1xf32>
    %51 = arith.mulf %40, %50 : vector<64x1xf32>
    %52 = vector.broadcast %29 : vector<1x256xf32> to vector<64x256xf32>
    %53 = arith.mulf %43, %52 : vector<64x256xf32>
    %cst_24 = arith.constant dense<0.000000e+00> : vector<64xf32>
    %54 = vector.multi_reduction <add>, %53, %cst_24 [1] : vector<64x256xf32> to vector<64xf32>
    %55 = vector.shape_cast %54 : vector<64xf32> to vector<64x1xf32>
    %56 = arith.addf %51, %55 : vector<64x1xf32>
    %c0_25 = arith.constant 0 : index
    %c0_26 = arith.constant 0 : index
    %57 = vector.load %arg9[%c0_25, %c0_26] : memref<64x1xf32, #tpu.memory_space<vmem>>, vector<64x1xf32>
    tpu.vector_store %arg9[%c0_25, %c0_26], %56 {strides = array<i32>} : memref<64x1xf32, #tpu.memory_space<vmem>>, vector<64x1xf32>,
    %c0_27 = arith.constant 0 : index
    %c0_28 = arith.constant 0 : index
    %58 = vector.load %arg10[%c0_27, %c0_28] : memref<64x1xf32, #tpu.memory_space<vmem>>, vector<64x1xf32>
    %59 = arith.mulf %40, %58 : vector<64x1xf32>
    %60 = vector.broadcast %34 : vector<1x256xf32> to vector<64x256xf32>
    %61 = arith.mulf %43, %60 : vector<64x256xf32>
    %cst_29 = arith.constant dense<0.000000e+00> : vector<64xf32>
    %62 = vector.multi_reduction <add>, %61, %cst_29 [1] : vector<64x256xf32> to vector<64xf32>
    %63 = vector.shape_cast %62 : vector<64xf32> to vector<64x1xf32>
    %64 = arith.addf %59, %63 : vector<64x1xf32>
    %c0_30 = arith.constant 0 : index
    %c0_31 = arith.constant 0 : index
    %65 = vector.load %arg10[%c0_30, %c0_31] : memref<64x1xf32, #tpu.memory_space<vmem>>, vector<64x1xf32>
    tpu.vector_store %arg10[%c0_30, %c0_31], %64 {strides = array<i32>} : memref<64x1xf32, #tpu.memory_space<vmem>>, vector<64x1xf32>,
    %c0_32 = arith.constant 0 : index
    %c0_33 = arith.constant 0 : index
    %66 = vector.load %arg7[%c0_32, %c0_33] : memref<64x1xf32, #tpu.memory_space<vmem>>, vector<64x1xf32>
    tpu.vector_store %arg7[%c0_32, %c0_33], %38 {strides = array<i32>} : memref<64x1xf32, #tpu.memory_space<vmem>>, vector<64x1xf32>,
    %c0_i32_34 = arith.constant 0 : i32
    %67 = arith.cmpi eq, %arg2, %c0_i32_34 : i32
    %68 = arith.extui %67 : i1 to i32
    %c0_i32_35 = arith.constant 0 : i32
    %69 = arith.cmpi ne, %68, %c0_i32_35 : i32
    scf.if %69 {
      %c0_36 = arith.constant 0 : index
      %c0_37 = arith.constant 0 : index
      %70 = vector.load %arg8[%c0_36, %c0_37] : memref<64x1xf32, #tpu.memory_space<vmem>>, vector<64x1xf32>
      %71 = tpu.reciprocal %70 {approx = true} : vector<64x1xf32> -> vector<64x1xf32>
      %c0_38 = arith.constant 0 : index
      %c0_39 = arith.constant 0 : index
      %72 = vector.load %arg10[%c0_38, %c0_39] : memref<64x1xf32, #tpu.memory_space<vmem>>, vector<64x1xf32>
      %73 = arith.mulf %72, %71 : vector<64x1xf32>
      %c0_40 = arith.constant 0 : index
      %c0_41 = arith.constant 0 : index
      %74 = vector.load %arg9[%c0_40, %c0_41] : memref<64x1xf32, #tpu.memory_space<vmem>>, vector<64x1xf32>
      %75 = arith.mulf %74, %71 : vector<64x1xf32>
      %cst_42 = arith.constant 1.600000e+01 : f32
      %76 = vector.broadcast %cst_42 : f32 to vector<64x1xf32>
      %77 = arith.mulf %73, %76 : vector<64x1xf32>
      %78 = arith.subf %75, %77 : vector<64x1xf32>
      %c0_43 = arith.constant 0 : index
      %c0_44 = arith.constant 0 : index
      %79 = vector.load %arg7[%c0_43, %c0_44] : memref<64x1xf32, #tpu.memory_space<vmem>>, vector<64x1xf32>
      %c0_45 = arith.constant 0 : index
      %c0_46 = arith.constant 0 : index
      %c0_47 = arith.constant 0 : index
      %80 = vector.load %arg4[%c0_45, %c0_46, %c0_47] : memref<1x64x1xf32, #tpu.memory_space<vmem>>, vector<1x64x1xf32>
      %81 = vector.shape_cast %80 : vector<1x64x1xf32> to vector<64x1xf32>
      %82 = arith.addf %79, %81 : vector<64x1xf32>
      %83 = tpu.iota {dimensions = array<i32: 1>} : vector<64x4xi32>
      %c0_i32_48 = arith.constant 0 : i32
      %84 = vector.broadcast %c0_i32_48 : i32 to vector<64x4xi32>
      %85 = arith.cmpi eq, %83, %84 : vector<64x4xi32>
      %c1_i32 = arith.constant 1 : i32
      %86 = vector.broadcast %c1_i32 : i32 to vector<64x4xi32>
      %87 = arith.cmpi eq, %83, %86 : vector<64x4xi32>
      %c2_i32 = arith.constant 2 : i32
      %88 = vector.broadcast %c2_i32 : i32 to vector<64x4xi32>
      %89 = arith.cmpi eq, %83, %88 : vector<64x4xi32>
      %cst_49 = arith.constant 0.000000e+00 : f32
      %90 = vector.shape_cast %82 : vector<64x1xf32> to vector<64x1xf32>
      %91 = vector.broadcast %90 : vector<64x1xf32> to vector<64x4xf32>
      %92 = vector.broadcast %cst_49 : f32 to vector<64x4xf32>
      %93 = arith.select %89, %91, %92 : vector<64x4xi1>, vector<64x4xf32>
      %94 = vector.shape_cast %73 : vector<64x1xf32> to vector<64x1xf32>
      %95 = vector.broadcast %94 : vector<64x1xf32> to vector<64x4xf32>
      %96 = arith.select %87, %95, %93 : vector<64x4xi1>, vector<64x4xf32>
      %97 = vector.shape_cast %78 : vector<64x1xf32> to vector<64x1xf32>
      %98 = vector.broadcast %97 : vector<64x1xf32> to vector<64x4xf32>
      %99 = arith.select %85, %98, %96 : vector<64x4xi1>, vector<64x4xf32>
      %c0_50 = arith.constant 0 : index
      %c0_51 = arith.constant 0 : index
      %c0_52 = arith.constant 0 : index
      %c0_53 = arith.constant 0 : index
      %100 = vector.load %arg6[%c0_50, %c0_51, %c0_52, %c0_53] : memref<1x1x64x4xf32, #tpu.memory_space<vmem>>, vector<1x1x64x4xf32>
      %101 = vector.shape_cast %100 : vector<1x1x64x4xf32> to vector<64x4xf32>
      %102 = vector.shape_cast %99 : vector<64x4xf32> to vector<1x1x64x4xf32>
      tpu.vector_store %arg6[%c0_50, %c0_51, %c0_52, %c0_53], %102 {strides = array<i32>} : memref<1x1x64x4xf32, #tpu.memory_space<vmem>>, vector<1x1x64x4xf32>,
    } else {
    }
    return
  }
  func.func @transform_0(%arg0: i32, %arg1: i32, %arg2: i32) -> (i32, i32, i32) {
    %c0_i32 = arith.constant 0 : i32
    %c0_i32_0 = arith.constant 0 : i32
    %c0_i32_1 = arith.constant 0 : i32
    return %arg0, %c0_i32, %c0_i32_0 : i32, i32, i32
  }
  func.func @transform_1(%arg0: i32, %arg1: i32, %arg2: i32) -> (i32, i32, i32) {
    %c0_i32 = arith.constant 0 : i32
    %c0_i32_0 = arith.constant 0 : i32
    %c0_i32_1 = arith.constant 0 : i32
    return %arg0, %c0_i32, %c0_i32_0 : i32, i32, i32
  }
  func.func @transform_2(%arg0: i32, %arg1: i32, %arg2: i32) -> (i32, i32, i32, i32) {
    %c0_i32 = arith.constant 0 : i32
    %c0_i32_0 = arith.constant 0 : i32
    return %arg0, %arg1, %c0_i32, %arg2 : i32, i32, i32, i32
  }
  func.func @transform_3(%arg0: i32, %arg1: i32, %arg2: i32) -> (i32, i32, i32, i32) {
    %c0_i32 = arith.constant 0 : i32
    %c0_i32_0 = arith.constant 0 : i32
    %c0_i32_1 = arith.constant 0 : i32
    return %arg0, %arg1, %c0_i32, %c0_i32_0 : i32, i32, i32, i32
  }
}

</mosaic_0001>

<llo_original>
// kernel: tpu_custom_call.1
$region0: #{tpu_custom_call.1}
  #allocation0 [shape = 'u32[]', space=smem, size = 0x4, offset = 0x4, fixed_abs, tag = 'smem constant byte address 0x4 - core index']
  #allocation1 [shape = 'u32[144,128]{1,0:T(1,128)}', space=vmem, size = 0x12000, scoped, tag = 'internal scratch']
  #allocation2 [shape = 'f32[64,1]{1,0:T(8,128)}', space=vmem, size = 0x8000, scoped, tag = 'scratch operand']
  #allocation3 [shape = 'f32[64,1]{1,0:T(8,128)}', space=vmem, size = 0x8000, scoped, tag = 'scratch operand']
  #allocation4 [shape = 'f32[64,1]{1,0:T(8,128)}', space=vmem, size = 0x8000, scoped, tag = 'scratch operand']
  #allocation5 [shape = 'f32[64,1]{1,0:T(8,128)}', space=vmem, size = 0x8000, scoped, tag = 'scratch operand']
  %s0 = inlined_call_operand.vmem [shape: f32[2,64,3], index: 0, kind: input, shape index: {}]
  %s1 = inlined_call_operand.vmem [shape: f32[2,64,1], index: 1, kind: input, shape index: {}]
  %s2 = inlined_call_operand.vmem [shape: f32[2,4,3,256], index: 2, kind: input, shape index: {}]
  %s3 = inlined_call_operand.vmem [shape: f32[2,4,64,4], index: 3, kind: output, shape index: {}]
  %s4 = sld [smem:[#allocation0]]
  $region53: #{tpu_custom_call.1} parent=0
    _
  %s6 = ssub.s32 1, %s4
  %s7 = scalar_select 0, %s6, %s4
  loop: start=0, step=1, limit=10
  $region2: #{tpu_custom_call.1} parent=0 // loop_pre_header
    _
  $region3: #{tpu_custom_call.1} parent=0 // loop_header
    %s9 = sphi 0, %s13
    %p10 = scmp.ge.s32.totalorder %s9, 10
    %s16 = sphi 0, %s35
    %s17 = sphi 0, %s31
    %s18 = sphi 0, %s27
    %s19 = sphi 0, %s16
    %s20 = sphi 0, %s17
    %s21 = sphi 0, %s18
    %s22 = sphi 0, %s19
    %s23 = sphi 0, %s20
    %s24 = sphi 0, %s21
    %s38 = sphi 0, %s40
    %s41 = sphi 0, %s38
    %s42 = sphi 0, %s41
    %s58 = sphi 0, %s42
    %s64 = sphi 0, %s66
    %s67 = sphi 0, %s64
    %s68 = sphi 0, %s67
    %s84 = sphi 0, %s68
    %s94 = sphi 0, %s96
    %s97 = sphi 0, %s94
    %s98 = sphi 0, %s97
    %s114 = sphi 0, %s98
    %s122 = sphi 0, %s124
    %s125 = sphi 0, %s122
    %s126 = sphi 0, %s125
    %s142 = sphi 0, %s126
  $region4: #{tpu_custom_call.1} parent=0 // loop_header_branch
    %12 = sbr.rel (%p10) target = $region8
  $region5: #{tpu_custom_call.1} parent=0 // loop_body
    %s14 = ssub.s32 %s9, 1
    %s15 = ssub.s32 %s9, 2
    %s25 = sadd.s32 1, %s18
    %p26 = scmp.ge.s32.totalorder %s25, 1
    %s27 = scalar_select %p26, 0, %s25
    %s28 = sadd.s32 1, %s17
    %s29 = scalar_select %p26, %s28, %s17
    %p30 = scmp.ge.s32.totalorder %s29, 4
    %s31 = scalar_select %p30, 0, %s29
    %s32 = sadd.s32 1, %s16
    %s33 = scalar_select %p30, %s32, %s16
    %p34 = scmp.ge.s32.totalorder %s33, 2
    %s35 = scalar_select %p34, 0, %s33
    %s36 = ssub.s32 %s16, %s35
    %p37 = scmp.eq.s32.totalorder %s36, 0
    %s39 = sadd.s32 %s38, 1
    %s40 = scalar_select %p37, %s38, %s39
    %p43 = pneg %p37
    %p44 = scmp.eq.s32.totalorder %s9, 7
    %p45 = por %p43, %p44
    %p46 = scmp.ne.s32.totalorder %s38, %s41
    %p47 = scmp.eq.s32.totalorder %s9, 0
    %p48 = por %p46, %p47
    %p49 = scmp.ne.s32.totalorder %s38, %s41
    %p50 = scmp.eq.s32.totalorder %s14, 7
    %p51 = por %p49, %p50
    %p52 = scmp.ne.s32.totalorder %s41, %s42
    %p53 = scmp.eq.s32.totalorder %s14, 0
    %p54 = por %p52, %p53
    %p55 = scmp.ne.s32.totalorder %s41, %s42
    %p56 = scmp.eq.s32.totalorder %s15, 7
    %p57 = por %p55, %p56
    %p59 = scmp.ne.s32.totalorder %s42, %s58
    %p60 = scmp.eq.s32.totalorder %s15, 0
    %p61 = por %p59, %p60
    %s62 = ssub.s32 %s16, %s35
    %p63 = scmp.eq.s32.totalorder %s62, 0
    %s65 = sadd.s32 %s64, 1
    %s66 = scalar_select %p63, %s64, %s65
    %p69 = pneg %p63
    %p70 = scmp.eq.s32.totalorder %s9, 7
    %p71 = por %p69, %p70
    %p72 = scmp.ne.s32.totalorder %s64, %s67
    %p73 = scmp.eq.s32.totalorder %s9, 0
    %p74 = por %p72, %p73
    %p75 = scmp.ne.s32.totalorder %s64, %s67
    %p76 = scmp.eq.s32.totalorder %s14, 7
    %p77 = por %p75, %p76
    %p78 = scmp.ne.s32.totalorder %s67, %s68
    %p79 = scmp.eq.s32.totalorder %s14, 0
    %p80 = por %p78, %p79
    %p81 = scmp.ne.s32.totalorder %s67, %s68
    %p82 = scmp.eq.s32.totalorder %s15, 7
    %p83 = por %p81, %p82
    %p85 = scmp.ne.s32.totalorder %s68, %s84
    %p86 = scmp.eq.s32.totalorder %s15, 0
    %p87 = por %p85, %p86
    %s88 = ssub.s32 %s16, %s35
    %s89 = ssub.s32 %s17, %s31
    %s90 = sor.u32 %s88, %s89
    %s91 = ssub.s32 %s18, %s27
    %s92 = sor.u32 %s90, %s91
    %p93 = scmp.eq.s32.totalorder %s92, 0
    %s95 = sadd.s32 %s94, 1
    %s96 = scalar_select %p93, %s94, %s95
    %p99 = pneg %p93
    %p100 = scmp.eq.s32.totalorder %s9, 7
    %p101 = por %p99, %p100
    %p102 = scmp.ne.s32.totalorder %s94, %s97
    %p103 = scmp.eq.s32.totalorder %s9, 0
    %p104 = por %p102, %p103
    %p105 = scmp.ne.s32.totalorder %s94, %s97
    %p106 = scmp.eq.s32.totalorder %s14, 7
    %p107 = por %p105, %p106
    %p108 = scmp.ne.s32.totalorder %s97, %s98
    %p109 = scmp.eq.s32.totalorder %s14, 0
    %p110 = por %p108, %p109
    %p111 = scmp.ne.s32.totalorder %s97, %s98
    %p112 = scmp.eq.s32.totalorder %s15, 7
    %p113 = por %p111, %p112
    %p115 = scmp.ne.s32.totalorder %s98, %s114
    %p116 = scmp.eq.s32.totalorder %s15, 0
    %p117 = por %p115, %p116
    %s118 = ssub.s32 %s16, %s35
    %s119 = ssub.s32 %s17, %s31
    %s120 = sor.u32 %s118, %s119
    %p121 = scmp.eq.s32.totalorder %s120, 0
    %s123 = sadd.s32 %s122, 1
    %s124 = scalar_select %p121, %s122, %s123
    %p127 = pneg %p121
    %p128 = scmp.eq.s32.totalorder %s9, 7
    %p129 = por %p127, %p128
    %p130 = scmp.ne.s32.totalorder %s122, %s125
    %p131 = scmp.eq.s32.totalorder %s9, 0
    %p132 = por %p130, %p131
    %p133 = scmp.ne.s32.totalorder %s122, %s125
    %p134 = scmp.eq.s32.totalorder %s14, 7
    %p135 = por %p133, %p134
    %p136 = scmp.ne.s32.totalorder %s125, %s126
    %p137 = scmp.eq.s32.totalorder %s14, 0
    %p138 = por %p136, %p137
    %p139 = scmp.ne.s32.totalorder %s125, %s126
    %p140 = scmp.eq.s32.totalorder %s15, 7
    %p141 = por %p139, %p140
    %p143 = scmp.ne.s32.totalorder %s126, %s142
    %p144 = scmp.eq.s32.totalorder %s15, 0
    %p145 = por %p143, %p144
    %p146 = scmp.le.s32.totalorder 1, %s9
    %p147 = scmp.lt.s32.totalorder %s9, 9
    %p148 = pnand %p146, %p147
    %p149 = pneg %p148
    // Predicated region
    $region9: #{tpu_custom_call.1} parent=5 // pred_check
      _
    $region10: #{tpu_custom_call.1} parent=5 // pred_check_branch
      %151 = sbr.rel (%p148) target = $region12
    $region11: #{tpu_custom_call.1} parent=5 // pred_region
      %s152 = ssub.s32 %s9, 1
    $region12: #{tpu_custom_call.1} parent=5 // pred_fallthru
      _
    %p153 = scmp.lt.s32.totalorder %s9, 8
    // Predicated region
    $region13: #{tpu_custom_call.1} parent=5 // pred_check
      %p154 = pneg %p153
    $region14: #{tpu_custom_call.1} parent=5 // pred_check_branch
      %156 = sbr.rel (%p154) target = $region16
    $region15: #{tpu_custom_call.1} parent=5 // pred_region
      // Predicated region
      $region17: #{tpu_custom_call.1} parent=15 // pred_check
        %p157 = pneg %p48
      $region18: #{tpu_custom_call.1} parent=15 // pred_check_branch
        %159 = sbr.rel (%p157) target = $region20
      $region19: #{tpu_custom_call.1} parent=15 // pred_region
        %p160 = scmp.lt.s32.totalorder %s16, 1
        %s161 = scalar_select %p160, %s16, 1
        %s162 = smul.addr %s161, 8
        %s163 = smul.addr %s162, 8
        %s164 = scalar_lea.vmem %s0, %s163
      $region20: #{tpu_custom_call.1} parent=15 // pred_fallthru
        _
      // Predicated region
      $region21: #{tpu_custom_call.1} parent=15 // pred_check
        %p165 = pneg %p74
      $region22: #{tpu_custom_call.1} parent=15 // pred_check_branch
        %167 = sbr.rel (%p165) target = $region24
      $region23: #{tpu_custom_call.1} parent=15 // pred_region
        %p168 = scmp.lt.s32.totalorder %s16, 1
        %s169 = scalar_select %p168, %s16, 1
        %s170 = smul.addr %s169, 8
        %s171 = smul.addr %s170, 8
        %s172 = scalar_lea.vmem %s1, %s171
      $region24: #{tpu_custom_call.1} parent=15 // pred_fallthru
        _
      // Predicated region
      $region25: #{tpu_custom_call.1} parent=15 // pred_check
        %p173 = pneg %p104
      $region26: #{tpu_custom_call.1} parent=15 // pred_check_branch
        %175 = sbr.rel (%p173) target = $region28
      $region27: #{tpu_custom_call.1} parent=15 // pred_region
        %s176 = smul.u32 2, %s18
        %p177 = scmp.lt.s32.totalorder %s16, 1
        %s178 = scalar_select %p177, %s16, 1
        %p179 = scmp.lt.s32.totalorder %s17, 3
        %s180 = scalar_select %p179, %s17, 3
        %p181 = scmp.lt.s32.totalorder %s176, 1
        %s182 = scalar_select %p181, %s176, 1
        %s183 = smul.addr %s180, 2
        %s184 = sadd.s32 %s182, %s183
        %s185 = smul.addr %s178, 8
        %s186 = sadd.s32 %s184, %s185
        %s187 = smul.addr %s186, 4
        %s188 = scalar_lea.vmem %s2, %s187
        %s189 = smul.u32 2, %s18
      $region28: #{tpu_custom_call.1} parent=15 // pred_fallthru
        _
    $region16: #{tpu_custom_call.1} parent=5 // pred_fallthru
      _
    %p190 = scmp.le.s32.totalorder 1, %s9
    %p191 = scmp.lt.s32.totalorder %s9, 9
    %p192 = pnand %p190, %p191
    %p193 = pneg %p192
    // Predicated region
    $region29: #{tpu_custom_call.1} parent=5 // pred_check
      _
    $region30: #{tpu_custom_call.1} parent=5 // pred_check_branch
      %195 = sbr.rel (%p192) target = $region32
    $region31: #{tpu_custom_call.1} parent=5 // pred_region
      %s196 = ssub.s32 %s9, 1
      %p197 = scmp.lt.s32.totalorder %s19, 1
      %s198 = scalar_select %p197, %s19, 1
      %s199 = smul.addr %s198, 8
      %s200 = smul.addr %s199, 8
      %s201 = scalar_lea.vmem %s0, %s200
      %p202 = pneg %p54
      %p203 = pneg %p51
      %p204 = scmp.lt.s32.totalorder %s19, 1
      %s205 = scalar_select %p204, %s19, 1
      %s206 = smul.addr %s205, 8
      %s207 = smul.addr %s206, 8
      %s208 = scalar_lea.vmem %s1, %s207
      %p209 = pneg %p80
      %p210 = pneg %p77
      %s211 = smul.u32 2, %s21
      %p212 = scmp.lt.s32.totalorder %s19, 1
      %s213 = scalar_select %p212, %s19, 1
      %p214 = scmp.lt.s32.totalorder %s20, 3
      %s215 = scalar_select %p214, %s20, 3
      %p216 = scmp.lt.s32.totalorder %s211, 1
      %s217 = scalar_select %p216, %s211, 1
      %s218 = smul.addr %s215, 2
      %s219 = sadd.s32 %s217, %s218
      %s220 = smul.addr %s213, 8
      %s221 = sadd.s32 %s219, %s220
      %s222 = smul.addr %s221, 4
      %s223 = scalar_lea.vmem %s2, %s222
      %p224 = pneg %p110
      %p225 = pneg %p107
      %p226 = pneg %p138
      %p227 = pneg %p135
      %p228 = scmp.lt.s32.totalorder %s19, 1
      %s229 = scalar_select %p228, %s19, 1
      %p230 = scmp.lt.s32.totalorder %s20, 3
      %s231 = scalar_select %p230, %s20, 3
      %s232 = smul.addr %s231, 8
      %s233 = smul.addr %s229, 32
      %s234 = sadd.s32 %s232, %s233
      %s235 = smul.addr %s234, 8
      %s236 = scalar_lea.vmem %s3, %s235
      %p237 = scmp.lt.s32.totalorder %s19, 1
      %s238 = scalar_select %p237, %s19, 1
      %s239 = smul.addr %s238, 8
      %s240 = smul.addr %s239, 8
      %s241 = scalar_lea.vmem %s0, %s240
      %p242 = scmp.lt.s32.totalorder %s19, 1
      %s243 = scalar_select %p242, %s19, 1
      %s244 = smul.addr %s243, 8
      %s245 = smul.addr %s244, 8
      %s246 = scalar_lea.vmem %s1, %s245
      %s247 = smul.u32 2, %s21
      %p248 = scmp.lt.s32.totalorder %s19, 1
      %s249 = scalar_select %p248, %s19, 1
      %p250 = scmp.lt.s32.totalorder %s20, 3
      %s251 = scalar_select %p250, %s20, 3
      %p252 = scmp.lt.s32.totalorder %s247, 1
      %s253 = scalar_select %p252, %s247, 1
      %s254 = smul.addr %s251, 2
      %s255 = sadd.s32 %s253, %s254
      %s256 = smul.addr %s249, 8
      %s257 = sadd.s32 %s255, %s256
      %s258 = smul.addr %s257, 4
      %s259 = scalar_lea.vmem %s2, %s258
      %s260 = smul.u32 2, %s21
      %p261 = scmp.lt.s32.totalorder %s19, 1
      %s262 = scalar_select %p261, %s19, 1
      %p263 = scmp.lt.s32.totalorder %s20, 3
      %s264 = scalar_select %p263, %s20, 3
      %s265 = smul.addr %s264, 8
      %s266 = smul.addr %s262, 32
      %s267 = sadd.s32 %s265, %s266
      %s268 = smul.addr %s267, 8
      %s269 = scalar_lea.vmem %s3, %s268
      %p270 = scmp.eq.s32.totalorder %s21, 0
      // Predicated region
      $region33: #{tpu_custom_call.1} parent=31 // pred_check
        %p271 = pneg %p270
      $region34: #{tpu_custom_call.1} parent=31 // pred_check_branch
        %273 = sbr.rel (%p271) target = $region36
      $region35: #{tpu_custom_call.1} parent=31 // pred_region
        %vm274 = vcmask 7168
        %275 = vst.msk [vmem:[#allocation2] sm:$0xff] %vm274, -1e+30
        %276 = vst.msk [vmem:[#allocation2 + $0x8] sm:$0xff] %vm274, -1e+30
        %277 = vst.msk [vmem:[#allocation2 + $0x10] sm:$0xff] %vm274, -1e+30
        %278 = vst.msk [vmem:[#allocation2 + $0x18] sm:$0xff] %vm274, -1e+30
        %279 = vst.msk [vmem:[#allocation2 + $0x20] sm:$0xff] %vm274, -1e+30
        %280 = vst.msk [vmem:[#allocation2 + $0x28] sm:$0xff] %vm274, -1e+30
        %281 = vst.msk [vmem:[#allocation2 + $0x30] sm:$0xff] %vm274, -1e+30
        %282 = vst.msk [vmem:[#allocation2 + $0x38] sm:$0xff] %vm274, -1e+30
        %283 = vst.msk [vmem:[#allocation3] sm:$0xff] %vm274, 0.0
        %284 = vst.msk [vmem:[#allocation3 + $0x8] sm:$0xff] %vm274, 0.0
        %285 = vst.msk [vmem:[#allocation3 + $0x10] sm:$0xff] %vm274, 0.0
        %286 = vst.msk [vmem:[#allocation3 + $0x18] sm:$0xff] %vm274, 0.0
        %287 = vst.msk [vmem:[#allocation3 + $0x20] sm:$0xff] %vm274, 0.0
        %288 = vst.msk [vmem:[#allocation3 + $0x28] sm:$0xff] %vm274, 0.0
        %289 = vst.msk [vmem:[#allocation3 + $0x30] sm:$0xff] %vm274, 0.0
        %290 = vst.msk [vmem:[#allocation3 + $0x38] sm:$0xff] %vm274, 0.0
        %291 = vst.msk [vmem:[#allocation4] sm:$0xff] %vm274, 0.0
        %292 = vst.msk [vmem:[#allocation4 + $0x8] sm:$0xff] %vm274, 0.0
        %293 = vst.msk [vmem:[#allocation4 + $0x10] sm:$0xff] %vm274, 0.0
        %294 = vst.msk [vmem:[#allocation4 + $0x18] sm:$0xff] %vm274, 0.0
        %295 = vst.msk [vmem:[#allocation4 + $0x20] sm:$0xff] %vm274, 0.0
        %296 = vst.msk [vmem:[#allocation4 + $0x28] sm:$0xff] %vm274, 0.0
        %297 = vst.msk [vmem:[#allocation4 + $0x30] sm:$0xff] %vm274, 0.0
        %298 = vst.msk [vmem:[#allocation4 + $0x38] sm:$0xff] %vm274, 0.0
        %299 = vst.msk [vmem:[#allocation5] sm:$0xff] %vm274, 0.0
        %300 = vst.msk [vmem:[#allocation5 + $0x8] sm:$0xff] %vm274, 0.0
        %301 = vst.msk [vmem:[#allocation5 + $0x10] sm:$0xff] %vm274, 0.0
        %302 = vst.msk [vmem:[#allocation5 + $0x18] sm:$0xff] %vm274, 0.0
        %303 = vst.msk [vmem:[#allocation5 + $0x20] sm:$0xff] %vm274, 0.0
        %304 = vst.msk [vmem:[#allocation5 + $0x28] sm:$0xff] %vm274, 0.0
        %305 = vst.msk [vmem:[#allocation5 + $0x30] sm:$0xff] %vm274, 0.0
        %306 = vst.msk [vmem:[#allocation5 + $0x38] sm:$0xff] %vm274, 0.0
      $region36: #{tpu_custom_call.1} parent=31 // pred_fallthru
        _
      %v307 = vld [vmem:[%s241] sm:$0xff]
      %v308 = vld [vmem:[%s241 + $0x8] sm:$0xff]
      %v309 = vld [vmem:[%s241 + $0x10] sm:$0xff]
      %v310 = vld [vmem:[%s241 + $0x18] sm:$0xff]
      %v311 = vld [vmem:[%s241 + $0x20] sm:$0xff]
      %v312 = vld [vmem:[%s241 + $0x28] sm:$0xff]
      %v313 = vld [vmem:[%s241 + $0x30] sm:$0xff]
      %v314 = vld [vmem:[%s241 + $0x38] sm:$0xff]
      %v315 = vld [vmem:[%s259] ss:$4 sm:$0x3]
      %s316 = scalar_lea.vmem %s259, 1
      %v317 = vld [vmem:[%s316] ss:$4 sm:$0x3]
      %s318 = scalar_lea.vmem %s259, 2
      %v319 = vld [vmem:[%s318] ss:$4 sm:$0x3]
      %321 = vset.pattern.permute.xlu0 0
      %322 = vperm.xlu0 %321, %v307
      %v323 = vpop.permute.xlu0 %322
      %326 = vset.pattern.permute.xlu0 0
      %327 = vperm.xlu0 %326, %v308
      %v328 = vpop.permute.xlu0 %327
      %331 = vset.pattern.permute.xlu0 0
      %332 = vperm.xlu0 %331, %v309
      %v333 = vpop.permute.xlu0 %332
      %336 = vset.pattern.permute.xlu0 0
      %337 = vperm.xlu0 %336, %v310
      %v338 = vpop.permute.xlu0 %337
      %341 = vset.pattern.permute.xlu0 0
      %342 = vperm.xlu0 %341, %v311
      %v343 = vpop.permute.xlu0 %342
      %346 = vset.pattern.permute.xlu0 0
      %347 = vperm.xlu0 %346, %v312
      %v348 = vpop.permute.xlu0 %347
      %351 = vset.pattern.permute.xlu0 0
      %352 = vperm.xlu0 %351, %v313
      %v353 = vpop.permute.xlu0 %352
      %356 = vset.pattern.permute.xlu0 0
      %357 = vperm.xlu0 %356, %v314
      %v358 = vpop.permute.xlu0 %357
      %v361 = vlaneseq
      %v362 = vshrl.u32 %v361, 7
      %v363 = vsub.s32 0, %v362
      %v364 = vrot.slane %v315, %v363
      %v365 = vlaneseq
      %v366 = vshrl.u32 %v365, 7
      %v367 = vsub.s32 1, %v366
      %v368 = vrot.slane %v315, %v367
      %v371 = vmul.f32 %v323, %v364
      %v372 = vmul.f32 %v323, %v368
      %v373 = vmul.f32 %v328, %v364
      %v374 = vmul.f32 %v328, %v368
      %v375 = vmul.f32 %v333, %v364
      %v376 = vmul.f32 %v333, %v368
      %v377 = vmul.f32 %v338, %v364
      %v378 = vmul.f32 %v338, %v368
      %v379 = vmul.f32 %v343, %v364
      %v380 = vmul.f32 %v343, %v368
      %v381 = vmul.f32 %v348, %v364
      %v382 = vmul.f32 %v348, %v368
      %v383 = vmul.f32 %v353, %v364
      %v384 = vmul.f32 %v353, %v368
      %v385 = vmul.f32 %v358, %v364
      %v386 = vmul.f32 %v358, %v368
      %387 = vset.pattern.permute.xlu0 1
      %388 = vperm.xlu0 %387, %v307
      %v389 = vpop.permute.xlu0 %388
      %391 = vset.pattern.permute.xlu0 1
      %392 = vperm.xlu0 %391, %v308
      %v393 = vpop.permute.xlu0 %392
      %395 = vset.pattern.permute.xlu0 1
      %396 = vperm.xlu0 %395, %v309
      %v397 = vpop.permute.xlu0 %396
      %399 = vset.pattern.permute.xlu0 1
      %400 = vperm.xlu0 %399, %v310
      %v401 = vpop.permute.xlu0 %400
      %403 = vset.pattern.permute.xlu0 1
      %404 = vperm.xlu0 %403, %v311
      %v405 = vpop.permute.xlu0 %404
      %407 = vset.pattern.permute.xlu0 1
      %408 = vperm.xlu0 %407, %v312
      %v409 = vpop.permute.xlu0 %408
      %411 = vset.pattern.permute.xlu0 1
      %412 = vperm.xlu0 %411, %v313
      %v413 = vpop.permute.xlu0 %412
      %415 = vset.pattern.permute.xlu0 1
      %416 = vperm.xlu0 %415, %v314
      %v417 = vpop.permute.xlu0 %416
      %v420 = vlaneseq
      %v421 = vshrl.u32 %v420, 7
      %v422 = vsub.s32 0, %v421
      %v423 = vrot.slane %v317, %v422
      %v424 = vlaneseq
      %v425 = vshrl.u32 %v424, 7
      %v426 = vsub.s32 1, %v425
      %v427 = vrot.slane %v317, %v426
      %v430 = vmul.f32 %v389, %v423
      %v431 = vmul.f32 %v389, %v427
      %v432 = vmul.f32 %v393, %v423
      %v433 = vmul.f32 %v393, %v427
      %v434 = vmul.f32 %v397, %v423
      %v435 = vmul.f32 %v397, %v427
      %v436 = vmul.f32 %v401, %v423
      %v437 = vmul.f32 %v401, %v427
      %v438 = vmul.f32 %v405, %v423
      %v439 = vmul.f32 %v405, %v427
      %v440 = vmul.f32 %v409, %v423
      %v441 = vmul.f32 %v409, %v427
      %v442 = vmul.f32 %v413, %v423
      %v443 = vmul.f32 %v413, %v427
      %v444 = vmul.f32 %v417, %v423
      %v445 = vmul.f32 %v417, %v427
      %v446 = vadd.f32 %v371, %v430
      %v447 = vadd.f32 %v372, %v431
      %v448 = vadd.f32 %v373, %v432
      %v449 = vadd.f32 %v374, %v433
      %v450 = vadd.f32 %v375, %v434
      %v451 = vadd.f32 %v376, %v435
      %v452 = vadd.f32 %v377, %v436
      %v453 = vadd.f32 %v378, %v437
      %v454 = vadd.f32 %v379, %v438
      %v455 = vadd.f32 %v380, %v439
      %v456 = vadd.f32 %v381, %v440
      %v457 = vadd.f32 %v382, %v441
      %v458 = vadd.f32 %v383, %v442
      %v459 = vadd.f32 %v384, %v443
      %v460 = vadd.f32 %v385, %v444
      %v461 = vadd.f32 %v386, %v445
      %462 = vset.pattern.permute.xlu0 2
      %463 = vperm.xlu0 %462, %v307
      %v464 = vpop.permute.xlu0 %463
      %466 = vset.pattern.permute.xlu0 2
      %467 = vperm.xlu0 %466, %v308
      %v468 = vpop.permute.xlu0 %467
      %470 = vset.pattern.permute.xlu0 2
      %471 = vperm.xlu0 %470, %v309
      %v472 = vpop.permute.xlu0 %471
      %474 = vset.pattern.permute.xlu0 2
      %475 = vperm.xlu0 %474, %v310
      %v476 = vpop.permute.xlu0 %475
      %478 = vset.pattern.permute.xlu0 2
      %479 = vperm.xlu0 %478, %v311
      %v480 = vpop.permute.xlu0 %479
      %482 = vset.pattern.permute.xlu0 2
      %483 = vperm.xlu0 %482, %v312
      %v484 = vpop.permute.xlu0 %483
      %486 = vset.pattern.permute.xlu0 2
      %487 = vperm.xlu0 %486, %v313
      %v488 = vpop.permute.xlu0 %487
      %490 = vset.pattern.permute.xlu0 2
      %491 = vperm.xlu0 %490, %v314
      %v492 = vpop.permute.xlu0 %491
      %v495 = vlaneseq
      %v496 = vshrl.u32 %v495, 7
      %v497 = vsub.s32 0, %v496
      %v498 = vrot.slane %v319, %v497
      %v499 = vlaneseq
      %v500 = vshrl.u32 %v499, 7
      %v501 = vsub.s32 1, %v500
      %v502 = vrot.slane %v319, %v501
      %v505 = vmul.f32 %v464, %v498
      %v506 = vmul.f32 %v464, %v502
      %v507 = vmul.f32 %v468, %v498
      %v508 = vmul.f32 %v468, %v502
      %v509 = vmul.f32 %v472, %v498
      %v510 = vmul.f32 %v472, %v502
      %v511 = vmul.f32 %v476, %v498
      %v512 = vmul.f32 %v476, %v502
      %v513 = vmul.f32 %v480, %v498
      %v514 = vmul.f32 %v480, %v502
      %v515 = vmul.f32 %v484, %v498
      %v516 = vmul.f32 %v484, %v502
      %v517 = vmul.f32 %v488, %v498
      %v518 = vmul.f32 %v488, %v502
      %v519 = vmul.f32 %v492, %v498
      %v520 = vmul.f32 %v492, %v502
      %v521 = vadd.f32 %v446, %v505
      %v522 = vadd.f32 %v447, %v506
      %v523 = vadd.f32 %v448, %v507
      %v524 = vadd.f32 %v449, %v508
      %v525 = vadd.f32 %v450, %v509
      %v526 = vadd.f32 %v451, %v510
      %v527 = vadd.f32 %v452, %v511
      %v528 = vadd.f32 %v453, %v512
      %v529 = vadd.f32 %v454, %v513
      %v530 = vadd.f32 %v455, %v514
      %v531 = vadd.f32 %v456, %v515
      %v532 = vadd.f32 %v457, %v516
      %v533 = vadd.f32 %v458, %v517
      %v534 = vadd.f32 %v459, %v518
      %v535 = vadd.f32 %v460, %v519
      %v536 = vadd.f32 %v461, %v520
      %v537 = vlaneseq
      %v538 = vand.u32 %v537, 127
      %v539 = vadd.s32 %v538, 128
      %s540 = smul.u32 %s21, 256
      %v541 = vstv %s540
      %v542 = vadd.s32 %v538, %v541
      %v543 = vadd.s32 %v539, %v541
      %v544 = vcvt.s32.f32 %v542
      %v545 = vcvt.s32.f32 %v543
      %v546 = vadd.f32 %v544, 0.5
      %v547 = vadd.f32 %v545, 0.5
      %v548 = vmul.f32 %v546, 0.0625
      %v549 = vmul.f32 %v547, 0.0625
      %v550 = vfloor.f32 %v548
      %v551 = vfloor.f32 %v549
      %v552 = vld [vmem:[#allocation2] sm:$0xff]
      %v553 = vld [vmem:[#allocation2 + $0x8] sm:$0xff]
      %v554 = vld [vmem:[#allocation2 + $0x10] sm:$0xff]
      %v555 = vld [vmem:[#allocation2 + $0x18] sm:$0xff]
      %v556 = vld [vmem:[#allocation2 + $0x20] sm:$0xff]
      %v557 = vld [vmem:[#allocation2 + $0x28] sm:$0xff]
      %v558 = vld [vmem:[#allocation2 + $0x30] sm:$0xff]
      %v559 = vld [vmem:[#allocation2 + $0x38] sm:$0xff]
      %v560 = vmax.f32 %v521, %v522
      %561 = vmax.xlane.f32.xlu0 %v560
      %v562 = vpop.xlane.xlu0 %561
      %v563 = vmax.f32 %v523, %v524
      %564 = vmax.xlane.f32.xlu0 %v563
      %v565 = vpop.xlane.xlu0 %564
      %v566 = vmax.f32 %v525, %v526
      %567 = vmax.xlane.f32.xlu0 %v566
      %v568 = vpop.xlane.xlu0 %567
      %v569 = vmax.f32 %v527, %v528
      %570 = vmax.xlane.f32.xlu0 %v569
      %v571 = vpop.xlane.xlu0 %570
      %v572 = vmax.f32 %v529, %v530
      %573 = vmax.xlane.f32.xlu0 %v572
      %v574 = vpop.xlane.xlu0 %573
      %v575 = vmax.f32 %v531, %v532
      %576 = vmax.xlane.f32.xlu0 %v575
      %v577 = vpop.xlane.xlu0 %576
      %v578 = vmax.f32 %v533, %v534
      %579 = vmax.xlane.f32.xlu0 %v578
      %v580 = vpop.xlane.xlu0 %579
      %v581 = vmax.f32 %v535, %v536
      %582 = vmax.xlane.f32.xlu0 %v581
      %v583 = vpop.xlane.xlu0 %582
      %v584 = vmax.f32 %v552, %v562
      %v585 = vmax.f32 %v553, %v565
      %v586 = vmax.f32 %v554, %v568
      %v587 = vmax.f32 %v555, %v571
      %v588 = vmax.f32 %v556, %v574
      %v589 = vmax.f32 %v557, %v577
      %v590 = vmax.f32 %v558, %v580
      %v591 = vmax.f32 %v559, %v583
      %v592 = vsub.f32 %v552, %v584
      %v593 = vsub.f32 %v553, %v585
      %v594 = vsub.f32 %v554, %v586
      %v595 = vsub.f32 %v555, %v587
      %v596 = vsub.f32 %v556, %v588
      %v597 = vsub.f32 %v557, %v589
      %v598 = vsub.f32 %v558, %v590
      %v599 = vsub.f32 %v559, %v591
      %v600 = vmul.f32 %v592, 1.442695
      %v601 = vpow.pop %v600
      %v602 = vmul.f32 %v593, 1.442695
      %v603 = vpow.pop %v602
      %v604 = vmul.f32 %v594, 1.442695
      %v605 = vpow.pop %v604
      %v606 = vmul.f32 %v595, 1.442695
      %v607 = vpow.pop %v606
      %v608 = vmul.f32 %v596, 1.442695
      %v609 = vpow.pop %v608
      %v610 = vmul.f32 %v597, 1.442695
      %v611 = vpow.pop %v610
      %v612 = vmul.f32 %v598, 1.442695
      %v613 = vpow.pop %v612
      %v614 = vmul.f32 %v599, 1.442695
      %v615 = vpow.pop %v614
      %617 = vset.pattern.permute.xlu0 0
      %618 = vperm.xlu0 %617, %v584
      %v619 = vpop.permute.xlu0 %618
      %622 = vset.pattern.permute.xlu0 0
      %623 = vperm.xlu0 %622, %v585
      %v624 = vpop.permute.xlu0 %623
      %627 = vset.pattern.permute.xlu0 0
      %628 = vperm.xlu0 %627, %v586
      %v629 = vpop.permute.xlu0 %628
      %632 = vset.pattern.permute.xlu0 0
      %633 = vperm.xlu0 %632, %v587
      %v634 = vpop.permute.xlu0 %633
      %637 = vset.pattern.permute.xlu0 0
      %638 = vperm.xlu0 %637, %v588
      %v639 = vpop.permute.xlu0 %638
      %642 = vset.pattern.permute.xlu0 0
      %643 = vperm.xlu0 %642, %v589
      %v644 = vpop.permute.xlu0 %643
      %647 = vset.pattern.permute.xlu0 0
      %648 = vperm.xlu0 %647, %v590
      %v649 = vpop.permute.xlu0 %648
      %652 = vset.pattern.permute.xlu0 0
      %653 = vperm.xlu0 %652, %v591
      %v654 = vpop.permute.xlu0 %653
      %v656 = vsub.f32 %v521, %v619
      %v657 = vsub.f32 %v522, %v619
      %v658 = vsub.f32 %v523, %v624
      %v659 = vsub.f32 %v524, %v624
      %v660 = vsub.f32 %v525, %v629
      %v661 = vsub.f32 %v526, %v629
      %v662 = vsub.f32 %v527, %v634
      %v663 = vsub.f32 %v528, %v634
      %v664 = vsub.f32 %v529, %v639
      %v665 = vsub.f32 %v530, %v639
      %v666 = vsub.f32 %v531, %v644
      %v667 = vsub.f32 %v532, %v644
      %v668 = vsub.f32 %v533, %v649
      %v669 = vsub.f32 %v534, %v649
      %v670 = vsub.f32 %v535, %v654
      %v671 = vsub.f32 %v536, %v654
      %v672 = vmul.f32 %v656, 1.442695
      %v673 = vpow.pop %v672
      %v674 = vmul.f32 %v657, 1.442695
      %v675 = vpow.pop %v674
      %v676 = vmul.f32 %v658, 1.442695
      %v677 = vpow.pop %v676
      %v678 = vmul.f32 %v659, 1.442695
      %v679 = vpow.pop %v678
      %v680 = vmul.f32 %v660, 1.442695
      %v681 = vpow.pop %v680
      %v682 = vmul.f32 %v661, 1.442695
      %v683 = vpow.pop %v682
      %v684 = vmul.f32 %v662, 1.442695
      %v685 = vpow.pop %v684
      %v686 = vmul.f32 %v663, 1.442695
      %v687 = vpow.pop %v686
      %v688 = vmul.f32 %v664, 1.442695
      %v689 = vpow.pop %v688
      %v690 = vmul.f32 %v665, 1.442695
      %v691 = vpow.pop %v690
      %v692 = vmul.f32 %v666, 1.442695
      %v693 = vpow.pop %v692
      %v694 = vmul.f32 %v667, 1.442695
      %v695 = vpow.pop %v694
      %v696 = vmul.f32 %v668, 1.442695
      %v697 = vpow.pop %v696
      %v698 = vmul.f32 %v669, 1.442695
      %v699 = vpow.pop %v698
      %v700 = vmul.f32 %v670, 1.442695
      %v701 = vpow.pop %v700
      %v702 = vmul.f32 %v671, 1.442695
      %v703 = vpow.pop %v702
      %v704 = vld [vmem:[#allocation3] sm:$0xff]
      %v705 = vld [vmem:[#allocation3 + $0x8] sm:$0xff]
      %v706 = vld [vmem:[#allocation3 + $0x10] sm:$0xff]
      %v707 = vld [vmem:[#allocation3 + $0x18] sm:$0xff]
      %v708 = vld [vmem:[#allocation3 + $0x20] sm:$0xff]
      %v709 = vld [vmem:[#allocation3 + $0x28] sm:$0xff]
      %v710 = vld [vmem:[#allocation3 + $0x30] sm:$0xff]
      %v711 = vld [vmem:[#allocation3 + $0x38] sm:$0xff]
      %v712 = vmul.f32 %v601, %v704
      %v713 = vmul.f32 %v603, %v705
      %v714 = vmul.f32 %v605, %v706
      %v715 = vmul.f32 %v607, %v707
      %v716 = vmul.f32 %v609, %v708
      %v717 = vmul.f32 %v611, %v709
      %v718 = vmul.f32 %v613, %v710
      %v719 = vmul.f32 %v615, %v711
      %v720 = vadd.f32 %v673, %v675
      %721 = vadd.xlane.f32.xlu0 %v720
      %v722 = vpop.xlane.xlu0 %721
      %v723 = vadd.f32 %v677, %v679
      %724 = vadd.xlane.f32.xlu0 %v723
      %v725 = vpop.xlane.xlu0 %724
      %v726 = vadd.f32 %v681, %v683
      %727 = vadd.xlane.f32.xlu0 %v726
      %v728 = vpop.xlane.xlu0 %727
      %v729 = vadd.f32 %v685, %v687
      %730 = vadd.xlane.f32.xlu0 %v729
      %v731 = vpop.xlane.xlu0 %730
      %v732 = vadd.f32 %v689, %v691
      %733 = vadd.xlane.f32.xlu0 %v732
      %v734 = vpop.xlane.xlu0 %733
      %v735 = vadd.f32 %v693, %v695
      %736 = vadd.xlane.f32.xlu0 %v735
      %v737 = vpop.xlane.xlu0 %736
      %v738 = vadd.f32 %v697, %v699
      %739 = vadd.xlane.f32.xlu0 %v738
      %v740 = vpop.xlane.xlu0 %739
      %v741 = vadd.f32 %v701, %v703
      %742 = vadd.xlane.f32.xlu0 %v741
      %v743 = vpop.xlane.xlu0 %742
      %v744 = vadd.f32 %v712, %v722
      %v745 = vadd.f32 %v713, %v725
      %v746 = vadd.f32 %v714, %v728
      %v747 = vadd.f32 %v715, %v731
      %v748 = vadd.f32 %v716, %v734
      %v749 = vadd.f32 %v717, %v737
      %v750 = vadd.f32 %v718, %v740
      %v751 = vadd.f32 %v719, %v743
      %vm752 = vcmask 7168
      %753 = vst.msk [vmem:[#allocation3] sm:$0xff] %vm752, %v744
      %754 = vst.msk [vmem:[#allocation3 + $0x8] sm:$0xff] %vm752, %v745
      %755 = vst.msk [vmem:[#allocation3 + $0x10] sm:$0xff] %vm752, %v746
      %756 = vst.msk [vmem:[#allocation3 + $0x18] sm:$0xff] %vm752, %v747
      %757 = vst.msk [vmem:[#allocation3 + $0x20] sm:$0xff] %vm752, %v748
      %758 = vst.msk [vmem:[#allocation3 + $0x28] sm:$0xff] %vm752, %v749
      %759 = vst.msk [vmem:[#allocation3 + $0x30] sm:$0xff] %vm752, %v750
      %760 = vst.msk [vmem:[#allocation3 + $0x38] sm:$0xff] %vm752, %v751
      %v761 = vld [vmem:[#allocation4] sm:$0xff]
      %v762 = vld [vmem:[#allocation4 + $0x8] sm:$0xff]
      %v763 = vld [vmem:[#allocation4 + $0x10] sm:$0xff]
      %v764 = vld [vmem:[#allocation4 + $0x18] sm:$0xff]
      %v765 = vld [vmem:[#allocation4 + $0x20] sm:$0xff]
      %v766 = vld [vmem:[#allocation4 + $0x28] sm:$0xff]
      %v767 = vld [vmem:[#allocation4 + $0x30] sm:$0xff]
      %v768 = vld [vmem:[#allocation4 + $0x38] sm:$0xff]
      %v769 = vmul.f32 %v601, %v761
      %v770 = vmul.f32 %v603, %v762
      %v771 = vmul.f32 %v605, %v763
      %v772 = vmul.f32 %v607, %v764
      %v773 = vmul.f32 %v609, %v765
      %v774 = vmul.f32 %v611, %v766
      %v775 = vmul.f32 %v613, %v767
      %v776 = vmul.f32 %v615, %v768
      %v777 = vmul.f32 %v673, %v544
      %v778 = vmul.f32 %v675, %v545
      %v779 = vmul.f32 %v677, %v544
      %v780 = vmul.f32 %v679, %v545
      %v781 = vmul.f32 %v681, %v544
      %v782 = vmul.f32 %v683, %v545
      %v783 = vmul.f32 %v685, %v544
      %v784 = vmul.f32 %v687, %v545
      %v785 = vmul.f32 %v689, %v544
      %v786 = vmul.f32 %v691, %v545
      %v787 = vmul.f32 %v693, %v544
      %v788 = vmul.f32 %v695, %v545
      %v789 = vmul.f32 %v697, %v544
      %v790 = vmul.f32 %v699, %v545
      %v791 = vmul.f32 %v701, %v544
      %v792 = vmul.f32 %v703, %v545
      %v793 = vadd.f32 %v777, %v778
      %794 = vadd.xlane.f32.xlu0 %v793
      %v795 = vpop.xlane.xlu0 %794
      %v796 = vadd.f32 %v779, %v780
      %797 = vadd.xlane.f32.xlu0 %v796
      %v798 = vpop.xlane.xlu0 %797
      %v799 = vadd.f32 %v781, %v782
      %800 = vadd.xlane.f32.xlu0 %v799
      %v801 = vpop.xlane.xlu0 %800
      %v802 = vadd.f32 %v783, %v784
      %803 = vadd.xlane.f32.xlu0 %v802
      %v804 = vpop.xlane.xlu0 %803
      %v805 = vadd.f32 %v785, %v786
      %806 = vadd.xlane.f32.xlu0 %v805
      %v807 = vpop.xlane.xlu0 %806
      %v808 = vadd.f32 %v787, %v788
      %809 = vadd.xlane.f32.xlu0 %v808
      %v810 = vpop.xlane.xlu0 %809
      %v811 = vadd.f32 %v789, %v790
      %812 = vadd.xlane.f32.xlu0 %v811
      %v813 = vpop.xlane.xlu0 %812
      %v814 = vadd.f32 %v791, %v792
      %815 = vadd.xlane.f32.xlu0 %v814
      %v816 = vpop.xlane.xlu0 %815
      %v817 = vadd.f32 %v769, %v795
      %v818 = vadd.f32 %v770, %v798
      %v819 = vadd.f32 %v771, %v801
      %v820 = vadd.f32 %v772, %v804
      %v821 = vadd.f32 %v773, %v807
      %v822 = vadd.f32 %v774, %v810
      %v823 = vadd.f32 %v775, %v813
      %v824 = vadd.f32 %v776, %v816
      %825 = vst.msk [vmem:[#allocation4] sm:$0xff] %vm752, %v817
      %826 = vst.msk [vmem:[#allocation4 + $0x8] sm:$0xff] %vm752, %v818
      %827 = vst.msk [vmem:[#allocation4 + $0x10] sm:$0xff] %vm752, %v819
      %828 = vst.msk [vmem:[#allocation4 + $0x18] sm:$0xff] %vm752, %v820
      %829 = vst.msk [vmem:[#allocation4 + $0x20] sm:$0xff] %vm752, %v821
      %830 = vst.msk [vmem:[#allocation4 + $0x28] sm:$0xff] %vm752, %v822
      %831 = vst.msk [vmem:[#allocation4 + $0x30] sm:$0xff] %vm752, %v823
      %832 = vst.msk [vmem:[#allocation4 + $0x38] sm:$0xff] %vm752, %v824
      %v833 = vld [vmem:[#allocation5] sm:$0xff]
      %v834 = vld [vmem:[#allocation5 + $0x8] sm:$0xff]
      %v835 = vld [vmem:[#allocation5 + $0x10] sm:$0xff]
      %v836 = vld [vmem:[#allocation5 + $0x18] sm:$0xff]
      %v837 = vld [vmem:[#allocation5 + $0x20] sm:$0xff]
      %v838 = vld [vmem:[#allocation5 + $0x28] sm:$0xff]
      %v839 = vld [vmem:[#allocation5 + $0x30] sm:$0xff]
      %v840 = vld [vmem:[#allocation5 + $0x38] sm:$0xff]
      %v841 = vmul.f32 %v601, %v833
      %v842 = vmul.f32 %v603, %v834
      %v843 = vmul.f32 %v605, %v835
      %v844 = vmul.f32 %v607, %v836
      %v845 = vmul.f32 %v609, %v837
      %v846 = vmul.f32 %v611, %v838
      %v847 = vmul.f32 %v613, %v839
      %v848 = vmul.f32 %v615, %v840
      %v849 = vmul.f32 %v673, %v550
      %v850 = vmul.f32 %v675, %v551
      %v851 = vmul.f32 %v677, %v550
      %v852 = vmul.f32 %v679, %v551
      %v853 = vmul.f32 %v681, %v550
      %v854 = vmul.f32 %v683, %v551
      %v855 = vmul.f32 %v685, %v550
      %v856 = vmul.f32 %v687, %v551
      %v857 = vmul.f32 %v689, %v550
      %v858 = vmul.f32 %v691, %v551
      %v859 = vmul.f32 %v693, %v550
      %v860 = vmul.f32 %v695, %v551
      %v861 = vmul.f32 %v697, %v550
      %v862 = vmul.f32 %v699, %v551
      %v863 = vmul.f32 %v701, %v550
      %v864 = vmul.f32 %v703, %v551
      %v865 = vadd.f32 %v849, %v850
      %866 = vadd.xlane.f32.xlu0 %v865
      %v867 = vpop.xlane.xlu0 %866
      %v868 = vadd.f32 %v851, %v852
      %869 = vadd.xlane.f32.xlu0 %v868
      %v870 = vpop.xlane.xlu0 %869
      %v871 = vadd.f32 %v853, %v854
      %872 = vadd.xlane.f32.xlu0 %v871
      %v873 = vpop.xlane.xlu0 %872
      %v874 = vadd.f32 %v855, %v856
      %875 = vadd.xlane.f32.xlu0 %v874
      %v876 = vpop.xlane.xlu0 %875
      %v877 = vadd.f32 %v857, %v858
      %878 = vadd.xlane.f32.xlu0 %v877
      %v879 = vpop.xlane.xlu0 %878
      %v880 = vadd.f32 %v859, %v860
      %881 = vadd.xlane.f32.xlu0 %v880
      %v882 = vpop.xlane.xlu0 %881
      %v883 = vadd.f32 %v861, %v862
      %884 = vadd.xlane.f32.xlu0 %v883
      %v885 = vpop.xlane.xlu0 %884
      %v886 = vadd.f32 %v863, %v864
      %887 = vadd.xlane.f32.xlu0 %v886
      %v888 = vpop.xlane.xlu0 %887
      %v889 = vadd.f32 %v841, %v867
      %v890 = vadd.f32 %v842, %v870
      %v891 = vadd.f32 %v843, %v873
      %v892 = vadd.f32 %v844, %v876
      %v893 = vadd.f32 %v845, %v879
      %v894 = vadd.f32 %v846, %v882
      %v895 = vadd.f32 %v847, %v885
      %v896 = vadd.f32 %v848, %v888
      %897 = vst.msk [vmem:[#allocation5] sm:$0xff] %vm752, %v889
      %898 = vst.msk [vmem:[#allocation5 + $0x8] sm:$0xff] %vm752, %v890
      %899 = vst.msk [vmem:[#allocation5 + $0x10] sm:$0xff] %vm752, %v891
      %900 = vst.msk [vmem:[#allocation5 + $0x18] sm:$0xff] %vm752, %v892
      %901 = vst.msk [vmem:[#allocation5 + $0x20] sm:$0xff] %vm752, %v893
      %902 = vst.msk [vmem:[#allocation5 + $0x28] sm:$0xff] %vm752, %v894
      %903 = vst.msk [vmem:[#allocation5 + $0x30] sm:$0xff] %vm752, %v895
      %904 = vst.msk [vmem:[#allocation5 + $0x38] sm:$0xff] %vm752, %v896
      %905 = vst.msk [vmem:[#allocation2] sm:$0xff] %vm752, %v584
      %906 = vst.msk [vmem:[#allocation2 + $0x8] sm:$0xff] %vm752, %v585
      %907 = vst.msk [vmem:[#allocation2 + $0x10] sm:$0xff] %vm752, %v586
      %908 = vst.msk [vmem:[#allocation2 + $0x18] sm:$0xff] %vm752, %v587
      %909 = vst.msk [vmem:[#allocation2 + $0x20] sm:$0xff] %vm752, %v588
      %910 = vst.msk [vmem:[#allocation2 + $0x28] sm:$0xff] %vm752, %v589
      %911 = vst.msk [vmem:[#allocation2 + $0x30] sm:$0xff] %vm752, %v590
      %912 = vst.msk [vmem:[#allocation2 + $0x38] sm:$0xff] %vm752, %v591
      // Predicated region
      $region37: #{tpu_custom_call.1} parent=31 // pred_check
        %p913 = pneg %p270
      $region38: #{tpu_custom_call.1} parent=31 // pred_check_branch
        %915 = sbr.rel (%p913) target = $region40
      $region39: #{tpu_custom_call.1} parent=31 // pred_region
        %v916 = vld [vmem:[#allocation3] sm:$0xff]
        %v917 = vld [vmem:[#allocation3 + $0x8] sm:$0xff]
        %v918 = vld [vmem:[#allocation3 + $0x10] sm:$0xff]
        %v919 = vld [vmem:[#allocation3 + $0x18] sm:$0xff]
        %v920 = vld [vmem:[#allocation3 + $0x20] sm:$0xff]
        %v921 = vld [vmem:[#allocation3 + $0x28] sm:$0xff]
        %v922 = vld [vmem:[#allocation3 + $0x30] sm:$0xff]
        %v923 = vld [vmem:[#allocation3 + $0x38] sm:$0xff]
        %v924 = vrcp.pop %v916
        %v925 = vrcp.pop %v917
        %v926 = vrcp.pop %v918
        %v927 = vrcp.pop %v919
        %v928 = vrcp.pop %v920
        %v929 = vrcp.pop %v921
        %v930 = vrcp.pop %v922
        %v931 = vrcp.pop %v923
        %v932 = vld [vmem:[#allocation5] sm:$0xff]
        %v933 = vld [vmem:[#allocation5 + $0x8] sm:$0xff]
        %v934 = vld [vmem:[#allocation5 + $0x10] sm:$0xff]
        %v935 = vld [vmem:[#allocation5 + $0x18] sm:$0xff]
        %v936 = vld [vmem:[#allocation5 + $0x20] sm:$0xff]
        %v937 = vld [vmem:[#allocation5 + $0x28] sm:$0xff]
        %v938 = vld [vmem:[#allocation5 + $0x30] sm:$0xff]
        %v939 = vld [vmem:[#allocation5 + $0x38] sm:$0xff]
        %v940 = vmul.f32 %v932, %v924
        %v941 = vmul.f32 %v933, %v925
        %v942 = vmul.f32 %v934, %v926
        %v943 = vmul.f32 %v935, %v927
        %v944 = vmul.f32 %v936, %v928
        %v945 = vmul.f32 %v937, %v929
        %v946 = vmul.f32 %v938, %v930
        %v947 = vmul.f32 %v939, %v931
        %v948 = vld [vmem:[#allocation4] sm:$0xff]
        %v949 = vld [vmem:[#allocation4 + $0x8] sm:$0xff]
        %v950 = vld [vmem:[#allocation4 + $0x10] sm:$0xff]
        %v951 = vld [vmem:[#allocation4 + $0x18] sm:$0xff]
        %v952 = vld [vmem:[#allocation4 + $0x20] sm:$0xff]
        %v953 = vld [vmem:[#allocation4 + $0x28] sm:$0xff]
        %v954 = vld [vmem:[#allocation4 + $0x30] sm:$0xff]
        %v955 = vld [vmem:[#allocation4 + $0x38] sm:$0xff]
        %v956 = vmul.f32 %v948, %v924
        %v957 = vmul.f32 %v949, %v925
        %v958 = vmul.f32 %v950, %v926
        %v959 = vmul.f32 %v951, %v927
        %v960 = vmul.f32 %v952, %v928
        %v961 = vmul.f32 %v953, %v929
        %v962 = vmul.f32 %v954, %v930
        %v963 = vmul.f32 %v955, %v931
        %v964 = vmul.f32 %v940, 16.0
        %v965 = vmul.f32 %v941, 16.0
        %v966 = vmul.f32 %v942, 16.0
        %v967 = vmul.f32 %v943, 16.0
        %v968 = vmul.f32 %v944, 16.0
        %v969 = vmul.f32 %v945, 16.0
        %v970 = vmul.f32 %v946, 16.0
        %v971 = vmul.f32 %v947, 16.0
        %v972 = vsub.f32 %v956, %v964
        %v973 = vsub.f32 %v957, %v965
        %v974 = vsub.f32 %v958, %v966
        %v975 = vsub.f32 %v959, %v967
        %v976 = vsub.f32 %v960, %v968
        %v977 = vsub.f32 %v961, %v969
        %v978 = vsub.f32 %v962, %v970
        %v979 = vsub.f32 %v963, %v971
        %v980 = vld [vmem:[#allocation2] sm:$0xff]
        %v981 = vld [vmem:[#allocation2 + $0x8] sm:$0xff]
        %v982 = vld [vmem:[#allocation2 + $0x10] sm:$0xff]
        %v983 = vld [vmem:[#allocation2 + $0x18] sm:$0xff]
        %v984 = vld [vmem:[#allocation2 + $0x20] sm:$0xff]
        %v985 = vld [vmem:[#allocation2 + $0x28] sm:$0xff]
        %v986 = vld [vmem:[#allocation2 + $0x30] sm:$0xff]
        %v987 = vld [vmem:[#allocation2 + $0x38] sm:$0xff]
        %v988 = vld [vmem:[%s246] sm:$0xff]
        %v989 = vld [vmem:[%s246 + $0x8] sm:$0xff]
        %v990 = vld [vmem:[%s246 + $0x10] sm:$0xff]
        %v991 = vld [vmem:[%s246 + $0x18] sm:$0xff]
        %v992 = vld [vmem:[%s246 + $0x20] sm:$0xff]
        %v993 = vld [vmem:[%s246 + $0x28] sm:$0xff]
        %v994 = vld [vmem:[%s246 + $0x30] sm:$0xff]
        %v995 = vld [vmem:[%s246 + $0x38] sm:$0xff]
        %v996 = vadd.f32 %v980, %v988
        %v997 = vadd.f32 %v981, %v989
        %v998 = vadd.f32 %v982, %v990
        %v999 = vadd.f32 %v983, %v991
        %v1000 = vadd.f32 %v984, %v992
        %v1001 = vadd.f32 %v985, %v993
        %v1002 = vadd.f32 %v986, %v994
        %v1003 = vadd.f32 %v987, %v995
        %vm1004 = vcmp.eq.s32.totalorder %v538, 0
        %vm1005 = vcmp.eq.s32.totalorder %v538, 1
        %vm1006 = vcmp.eq.s32.totalorder %v538, 2
        %1008 = vset.pattern.permute.xlu0 0
        %1009 = vperm.xlu0 %1008, %v996
        %v1010 = vpop.permute.xlu0 %1009
        %1013 = vset.pattern.permute.xlu0 0
        %1014 = vperm.xlu0 %1013, %v997
        %v1015 = vpop.permute.xlu0 %1014
        %1018 = vset.pattern.permute.xlu0 0
        %1019 = vperm.xlu0 %1018, %v998
        %v1020 = vpop.permute.xlu0 %1019
        %1023 = vset.pattern.permute.xlu0 0
        %1024 = vperm.xlu0 %1023, %v999
        %v1025 = vpop.permute.xlu0 %1024
        %1028 = vset.pattern.permute.xlu0 0
        %1029 = vperm.xlu0 %1028, %v1000
        %v1030 = vpop.permute.xlu0 %1029
        %1033 = vset.pattern.permute.xlu0 0
        %1034 = vperm.xlu0 %1033, %v1001
        %v1035 = vpop.permute.xlu0 %1034
        %1038 = vset.pattern.permute.xlu0 0
        %1039 = vperm.xlu0 %1038, %v1002
        %v1040 = vpop.permute.xlu0 %1039
        %1043 = vset.pattern.permute.xlu0 0
        %1044 = vperm.xlu0 %1043, %v1003
        %v1045 = vpop.permute.xlu0 %1044
        %v1047 = vsel %vm1006, %v1010, 0.0
        %v1048 = vsel %vm1006, %v1015, 0.0
        %v1049 = vsel %vm1006, %v1020, 0.0
        %v1050 = vsel %vm1006, %v1025, 0.0
        %v1051 = vsel %vm1006, %v1030, 0.0
        %v1052 = vsel %vm1006, %v1035, 0.0
        %v1053 = vsel %vm1006, %v1040, 0.0
        %v1054 = vsel %vm1006, %v1045, 0.0
        %1056 = vset.pattern.permute.xlu0 0
        %1057 = vperm.xlu0 %1056, %v940
        %v1058 = vpop.permute.xlu0 %1057
        %1061 = vset.pattern.permute.xlu0 0
        %1062 = vperm.xlu0 %1061, %v941
        %v1063 = vpop.permute.xlu0 %1062
        %1066 = vset.pattern.permute.xlu0 0
        %1067 = vperm.xlu0 %1066, %v942
        %v1068 = vpop.permute.xlu0 %1067
        %1071 = vset.pattern.permute.xlu0 0
        %1072 = vperm.xlu0 %1071, %v943
        %v1073 = vpop.permute.xlu0 %1072
        %1076 = vset.pattern.permute.xlu0 0
        %1077 = vperm.xlu0 %1076, %v944
        %v1078 = vpop.permute.xlu0 %1077
        %1081 = vset.pattern.permute.xlu0 0
        %1082 = vperm.xlu0 %1081, %v945
        %v1083 = vpop.permute.xlu0 %1082
        %1086 = vset.pattern.permute.xlu0 0
        %1087 = vperm.xlu0 %1086, %v946
        %v1088 = vpop.permute.xlu0 %1087
        %1091 = vset.pattern.permute.xlu0 0
        %1092 = vperm.xlu0 %1091, %v947
        %v1093 = vpop.permute.xlu0 %1092
        %v1095 = vsel %vm1005, %v1058, %v1047
        %v1096 = vsel %vm1005, %v1063, %v1048
        %v1097 = vsel %vm1005, %v1068, %v1049
        %v1098 = vsel %vm1005, %v1073, %v1050
        %v1099 = vsel %vm1005, %v1078, %v1051
        %v1100 = vsel %vm1005, %v1083, %v1052
        %v1101 = vsel %vm1005, %v1088, %v1053
        %v1102 = vsel %vm1005, %v1093, %v1054
        %1104 = vset.pattern.permute.xlu0 0
        %1105 = vperm.xlu0 %1104, %v972
        %v1106 = vpop.permute.xlu0 %1105
        %1109 = vset.pattern.permute.xlu0 0
        %1110 = vperm.xlu0 %1109, %v973
        %v1111 = vpop.permute.xlu0 %1110
        %1114 = vset.pattern.permute.xlu0 0
        %1115 = vperm.xlu0 %1114, %v974
        %v1116 = vpop.permute.xlu0 %1115
        %1119 = vset.pattern.permute.xlu0 0
        %1120 = vperm.xlu0 %1119, %v975
        %v1121 = vpop.permute.xlu0 %1120
        %1124 = vset.pattern.permute.xlu0 0
        %1125 = vperm.xlu0 %1124, %v976
        %v1126 = vpop.permute.xlu0 %1125
        %1129 = vset.pattern.permute.xlu0 0
        %1130 = vperm.xlu0 %1129, %v977
        %v1131 = vpop.permute.xlu0 %1130
        %1134 = vset.pattern.permute.xlu0 0
        %1135 = vperm.xlu0 %1134, %v978
        %v1136 = vpop.permute.xlu0 %1135
        %1139 = vset.pattern.permute.xlu0 0
        %1140 = vperm.xlu0 %1139, %v979
        %v1141 = vpop.permute.xlu0 %1140
        %v1143 = vsel %vm1004, %v1106, %v1095
        %v1144 = vsel %vm1004, %v1111, %v1096
        %v1145 = vsel %vm1004, %v1116, %v1097
        %v1146 = vsel %vm1004, %v1121, %v1098
        %v1147 = vsel %vm1004, %v1126, %v1099
        %v1148 = vsel %vm1004, %v1131, %v1100
        %v1149 = vsel %vm1004, %v1136, %v1101
        %v1150 = vsel %vm1004, %v1141, %v1102
        %vm1151 = vcmask 31744
        %1152 = vst.msk [vmem:[%s269] sm:$0xff] %vm1151, %v1143
        %1153 = vst.msk [vmem:[%s269 + $0x8] sm:$0xff] %vm1151, %v1144
        %1154 = vst.msk [vmem:[%s269 + $0x10] sm:$0xff] %vm1151, %v1145
        %1155 = vst.msk [vmem:[%s269 + $0x18] sm:$0xff] %vm1151, %v1146
        %1156 = vst.msk [vmem:[%s269 + $0x20] sm:$0xff] %vm1151, %v1147
        %1157 = vst.msk [vmem:[%s269 + $0x28] sm:$0xff] %vm1151, %v1148
        %1158 = vst.msk [vmem:[%s269 + $0x30] sm:$0xff] %vm1151, %v1149
        %1159 = vst.msk [vmem:[%s269 + $0x38] sm:$0xff] %vm1151, %v1150
      $region40: #{tpu_custom_call.1} parent=31 // pred_fallthru
        _
      %p1160 = scmp.lt.s32.totalorder %s19, 1
      %s1161 = scalar_select %p1160, %s19, 1
      %p1162 = scmp.lt.s32.totalorder %s20, 3
      %s1163 = scalar_select %p1162, %s20, 3
      %s1164 = smul.addr %s1163, 8
      %s1165 = smul.addr %s1161, 32
      %s1166 = sadd.s32 %s1164, %s1165
      %s1167 = smul.addr %s1166, 8
      %s1168 = scalar_lea.vmem %s3, %s1167
      // Predicated region
      $region41: #{tpu_custom_call.1} parent=31 // pred_check
        %p1169 = pneg %p135
      $region42: #{tpu_custom_call.1} parent=31 // pred_check_branch
        %1171 = sbr.rel (%p1169) target = $region44
      $region43: #{tpu_custom_call.1} parent=31 // pred_region
        _
      $region44: #{tpu_custom_call.1} parent=31 // pred_fallthru
        _
    $region32: #{tpu_custom_call.1} parent=5 // pred_fallthru
      _
    %p1172 = scmp.le.s32.totalorder 2, %s9
    // Predicated region
    $region45: #{tpu_custom_call.1} parent=5 // pred_check
      %p1173 = pneg %p1172
    $region46: #{tpu_custom_call.1} parent=5 // pred_check_branch
      %1175 = sbr.rel (%p1173) target = $region48
    $region47: #{tpu_custom_call.1} parent=5 // pred_region
      %s1176 = ssub.s32 %s9, 2
      // Predicated region
      $region49: #{tpu_custom_call.1} parent=47 // pred_check
        %p1177 = pneg %p141
      $region50: #{tpu_custom_call.1} parent=47 // pred_check_branch
        %1179 = sbr.rel (%p1177) target = $region52
      $region51: #{tpu_custom_call.1} parent=47 // pred_region
        %p1180 = scmp.lt.s32.totalorder %s22, 1
        %s1181 = scalar_select %p1180, %s22, 1
        %p1182 = scmp.lt.s32.totalorder %s23, 3
        %s1183 = scalar_select %p1182, %s23, 3
        %s1184 = smul.addr %s1183, 8
        %s1185 = smul.addr %s1181, 32
        %s1186 = sadd.s32 %s1184, %s1185
        %s1187 = smul.addr %s1186, 8
        %s1188 = scalar_lea.vmem %s3, %s1187
      $region52: #{tpu_custom_call.1} parent=47 // pred_fallthru
        _
    $region48: #{tpu_custom_call.1} parent=5 // pred_fallthru
      _
  $region6: #{tpu_custom_call.1} parent=0 // loop_footer
    %s13 = sadd.s32 1, %s9
  $region7: #{tpu_custom_call.1} parent=0 // loop_footer_branch
    %8 = sbr.rel target = $region3
  $region8: #{tpu_custom_call.1} parent=0 // loop_exit
    _

</llo_original>
